<compile_context>
chip_gen: v7x
topology: tpu7x:2x2x1
jax: 0.10.0
libtpu: 0.0.40
codegen_flags: <defaults>
</compile_context>

<pallas_src>
import functools

import jax
import jax.numpy as jnp
from jax import lax
from jax.experimental import pallas as pl
from jax.experimental.pallas import tpu as pltpu


# ----------------------------- in-kernel helpers ----------------------------

def _hshift(x, dx, cin, wl, keep_neg, keep_pos):
    """out[r, w*cin + c] = x[r, (w+dx)*cin + c]; zero where column w+dx is outside."""
    if dx == 0:
        return x
    y = pltpu.roll(x, (-dx * cin) % wl, axis=1)      # lane rotate (XLU)
    return jnp.where(keep_pos if dx > 0 else keep_neg, y, 0.0)


def _vshift(x, dy, rows, keep_neg, keep_pos):
    """out[r, :] = x[r+dy, :]; zero where row r+dy falls outside the current image."""
    if dy == 0:
        return x
    y = pltpu.roll(x, (-dy) % rows, axis=0)          # sublane rotate (XLU)
    return jnp.where(keep_pos if dy > 0 else keep_neg, y, 0.0)


def _module_ers_stage(x, dw_ref, b1_ref, pw_ref, b2_ref, masks, *,
                      rows, cin, wl, slope):
    """One moduleERS: depthwise3x3 + BN1 + LeakyReLU + pointwise + BN + LeakyReLU.

    x:      (rows, W*cin) f32, channels fastest in the lane dim, rows = images*H
    dw_ref: (9, W*cin)      depthwise weights (BN1 scale folded), tiled along W
    b1_ref: (1, W*cin)      BN1 bias
    pw_ref: (W*cin, W*cout) block-diagonal pointwise weights (BN2 scale folded)
    b2_ref: (1, W*cout)     BN2 bias
    Residual (if any) is added by the caller (matches relu2(x) + inputs).
    """
    m_dx_neg, m_dx_pos, m_dy_neg, m_dy_pos = masks

    # Depthwise 3x3 with implicit zero padding.  Shifted copies are consumed
    # immediately (one live copy at a time) to bound vreg pressure for large
    # row tiles.
    acc = None
    for dy in (-1, 0, 1):
        xv = _vshift(x, dy, rows, m_dy_neg, m_dy_pos)
        for dx in (-1, 0, 1):
            k = (dy + 1) * 3 + (dx + 1)
            t = _hshift(xv, dx, cin, wl, m_dx_neg, m_dx_pos) * dw_ref[k:k + 1, :]
            acc = t if acc is None else acc + t

    y = acc + b1_ref[...]                      # BN1 bias (scale folded into dw)
    y = jnp.maximum(y, slope * y)              # LeakyReLU(0.1): one VPU max

    # Pointwise 1x1 as a lane-dense block-diagonal MXU matmul.  bf16 inputs
    # (when enabled) at native MXU rate, f32 accumulate.
    y2 = jnp.dot(y.astype(pw_ref.dtype), pw_ref[...],
                 preferred_element_type=jnp.float32)
    y2 = y2 + b2_ref[...]                      # BN2 bias (scale folded into pw)
    return jnp.maximum(y2, slope * y2)         # LeakyReLU(0.1)


def _basic_block_kernel(x_ref,
                        dw1_ref, b11_ref, pw1_ref, b21_ref,
                        dw2_ref, b12_ref, pw2_ref, b22_ref,
                        out_ref, *, H, Cin, residual2, slope):
    rows, wi = x_ref.shape                     # rows = images_per_step * H
    x = x_ref[...].astype(jnp.float32)

    # Boundary masks, hoisted once and shared by both moduleERS stages.
    row_in_img = lax.broadcasted_iota(jnp.int32, (rows, wi), 0) % H
    lane = lax.broadcasted_iota(jnp.int32, (rows, wi), 1)
    masks = (lane >= Cin,                      # dx = -1 valid
             lane < wi - Cin,                  # dx = +1 valid
             row_in_img >= 1,                  # dy = -1 valid
             row_in_img < H - 1)               # dy = +1 valid

    # moduleERS #1: Cin -> Cin, residual add of its own input (always).
    h1 = _module_ers_stage(x, dw1_ref, b11_ref, pw1_ref, b21_ref, masks,
                           rows=rows, cin=Cin, wl=wi, slope=slope)
    h1 = h1 + x

    # moduleERS #2: Cin -> Cout, residual only if Cin == Cout.
    h2 = _module_ers_stage(h1, dw2_ref, b12_ref, pw2_ref, b22_ref, masks,
                           rows=rows, cin=Cin, wl=wi, slope=slope)
    if residual2:
        h2 = h2 + h1

    out_ref[...] = h2.astype(out_ref.dtype)    # lane-dense, unmasked store


# ------------------------------ wrapper glue ---------------------------------

def _fold_bn(gamma, beta, running_mean, running_var, eps=1e-3):
    scale = gamma * lax.rsqrt(running_var + eps)   # eps=0.001 as in the module
    bias = beta - running_mean * scale
    return scale.reshape(1, -1), bias.reshape(1, -1)


def init_module_ers_params(key, cin, cout):
    ks = jax.random.split(key, 10)
    dw = 0.2 * jax.random.normal(ks[0], (3, 3, cin), jnp.float32)
    pw = 0.2 * jax.random.normal(ks[1], (cin, cout), jnp.float32)
    g1 = jax.random.uniform(ks[2], (cin,), jnp.float32, 0.5, 1.5)
    be1 = 0.1 * jax.random.normal(ks[3], (cin,), jnp.float32)
    rm1 = 0.1 * jax.random.normal(ks[4], (cin,), jnp.float32)
    rv1 = jax.random.uniform(ks[5], (cin,), jnp.float32, 0.5, 1.5)
    g2 = jax.random.uniform(ks[6], (cout,), jnp.float32, 0.5, 1.5)
    be2 = 0.1 * jax.random.normal(ks[7], (cout,), jnp.float32)
    rm2 = 0.1 * jax.random.normal(ks[8], (cout,), jnp.float32)
    rv2 = jax.random.uniform(ks[9], (cout,), jnp.float32, 0.5, 1.5)
    s1, b1 = _fold_bn(g1, be1, rm1, rv1)
    s2, b2 = _fold_bn(g2, be2, rm2, rv2)
    return (dw, pw, s1, b1, s2, b2)


def _prep_stage_operands(params, W, pw_dtype):
    """Fold BN scales into conv weights and tile along W for lane-dense slabs."""
    dw, pw, s1, b1, s2, b2 = params
    cin, cout = pw.shape
    dw_f = dw * s1.reshape(1, 1, cin)                        # fold BN1 scale
    dw_t = jnp.tile(dw_f.reshape(9, cin), (1, W))            # (9, W*cin)
    b1_t = jnp.tile(b1.reshape(1, cin), (1, W))              # (1, W*cin)
    pw_f = pw * s2.reshape(1, cout)                          # fold BN2 scale
    eye = jnp.eye(W, dtype=jnp.float32)
    pw_big = (eye[:, None, :, None] * pw_f[None, :, None, :]
              ).reshape(W * cin, W * cout).astype(pw_dtype)  # block-diagonal
    b2_t = jnp.tile(b2.reshape(1, cout), (1, W))             # (1, W*cout)
    return dw_t, b1_t, pw_big, b2_t


def basic_block_lane_dense(x_rows, params1, params2, *, H, W, slope=0.1,
                           pointwise_bf16=True, rows_per_step=None,
                           single_buffer_weights=True):
    """Fused BasicBlock on a lane-dense activation slab.

    x_rows: (N*H, W*Cin) float32, channel fastest within the lane dimension.
    Returns (N*H, W*Cout) in the same layout so consecutive BasicBlocks can be
    chained without any NCHW<->lane-dense conversion in between.
    """
    R, wi = x_rows.shape
    cin1, cout1 = params1[1].shape
    cin2, Cout = params2[1].shape
    Cin = cin1
    assert wi == W * Cin and R % H == 0
    assert cout1 == Cin and cin2 == Cin, "moduleERS #1 must be Cin->Cin"
    wo = W * Cout
    # Lane-dense requirement (assert instead of silently relayouting).
    assert wi % 128 == 0 and wo % 128 == 0, \
        "W*Cin and W*Cout must be multiples of 128 for lane-dense slabs"

    N = R // H
    if rows_per_step is None:
        # ~64 rows/step keeps live f32 data within the vreg file at wl=128
        # while giving the MXU an M dimension several times larger than H.
        nb = max(1, min(N, max(1, 64 // H)))
        while N % nb:
            nb -= 1
        rows_per_step = nb * H
    assert rows_per_step % H == 0 and R % rows_per_step == 0

    pw_dtype = jnp.bfloat16 if pointwise_bf16 else jnp.float32
    ops1 = _prep_stage_operands(params1, W, pw_dtype)
    ops2 = _prep_stage_operands(params2, W, pw_dtype)

    kernel = functools.partial(
        _basic_block_kernel, H=H, Cin=Cin,
        residual2=(Cin == Cout), slope=slope)

    grid = (R // rows_per_step,)

    def run(use_buffered):
        def wspec(shape):
            if use_buffered:
                # Grid-invariant weights: single buffer (halves their VMEM).
                return pl.BlockSpec(shape, lambda i: (0, 0),
                                    pipeline_mode=pl.Buffered(1))
            return pl.BlockSpec(shape, lambda i: (0, 0))

        return pl.pallas_call(
            kernel,
            out_shape=jax.ShapeDtypeStruct((R, wo), x_rows.dtype),
            grid_spec=pltpu.PrefetchScalarGridSpec(
                num_scalar_prefetch=0,
                grid=grid,
                in_specs=[
                    pl.BlockSpec((rows_per_step, wi), lambda i: (i, 0)),  # x
                    wspec((9, wi)),        # dw1 (tiled)
                    wspec((1, wi)),        # bn1 bias of stage 1
                    wspec((wi, wi)),       # pw1 block-diag (bf16)
                    wspec((1, wi)),        # bn  bias of stage 1
                    wspec((9, wi)),        # dw2 (tiled)
                    wspec((1, wi)),        # bn1 bias of stage 2
                    wspec((wi, wo)),       # pw2 block-diag (bf16)
                    wspec((1, wo)),        # bn  bias of stage 2
                ],
                out_specs=pl.BlockSpec((rows_per_step, wo), lambda i: (i, 0)),
            ),
            compiler_params=pltpu.CompilerParams(
                dimension_semantics=("parallel",),
                vmem_limit_bytes=32 * 1024 * 1024),
        )(x_rows, *ops1, *ops2)

    if single_buffer_weights and hasattr(pl, "Buffered"):
        try:
            return run(True)
        except Exception:
            pass  # older jax without pipeline_mode support: default buffering
    return run(False)


def basic_block(x_nchw, params1, params2, **kw):
    """Fused BasicBlock.forward with PyTorch-style NCHW in/out.

    The NCHW <-> lane-dense conversion is a real HBM pass; in a full decoder
    it should be paid once per network by chaining basic_block_lane_dense.
    """
    N, Cin, H, W = x_nchw.shape
    Cout = params2[1].shape[1]
    x_rows = jnp.transpose(x_nchw, (0, 2, 3, 1)).reshape(N * H, W * Cin)
    out = basic_block_lane_dense(x_rows, params1, params2, H=H, W=W, **kw)
    return jnp.transpose(out.reshape(N, H, W, Cout), (0, 3, 1, 2))


# ------------------------------ pure-JAX reference ---------------------------

def _module_ers_ref(x_nhwc, params, slope=0.1):
    dw, pw, s1, b1, s2, b2 = params
    cin, cout = pw.shape
    y = lax.conv_general_dilated(
        x_nhwc, dw.reshape(3, 3, 1, cin),
        window_strides=(1, 1), padding=((1, 1), (1, 1)),
        dimension_numbers=('NHWC', 'HWIO', 'NHWC'),
        feature_group_count=cin, precision=lax.Precision.HIGHEST)
    y = y * s1 + b1
    y = jnp.where(y > 0, y, slope * y)
    y = jnp.einsum('nhwc,co->nhwo', y, pw, precision=lax.Precision.HIGHEST)
    y = y * s2 + b2
    y = jnp.where(y > 0, y, slope * y)
    if cin == cout:
        y = y + x_nhwc
    return y


def basic_block_ref(x_nchw, params1, params2, slope=0.1):
    x = jnp.transpose(x_nchw, (0, 2, 3, 1))
    x = _module_ers_ref(x, params1, slope)
    x = _module_ers_ref(x, params2, slope)
    return jnp.transpose(x, (0, 3, 1, 2))


# ----------------------------------- main ------------------------------------

if __name__ == "__main__":
    key = jax.random.PRNGKey(0)
    kx, kp = jax.random.split(key)
    k1, k2 = jax.random.split(kp)

    N, C_IN, C_OUT, H, W = 2, 8, 16, 16, 16          # W*C_IN = 128 -> lane-dense
    x = jax.random.normal(kx, (N, C_IN, H, W), jnp.float32)   # NCHW, like PyTorch

    p1 = init_module_ers_params(k1, C_IN, C_IN)      # conv1: Cin -> Cin (residual)
    p2 = init_module_ers_params(k2, C_IN, C_OUT)     # conv2: Cin -> Cout

    ref = jax.block_until_ready(basic_block_ref(x, p1, p2))

    # f32 pointwise path: tight check of kernel logic (roll+mask padding,
    # multi-image row batching, block-diagonal pointwise, residuals).
    out_f32 = jax.block_until_ready(basic_block(x, p1, p2, pointwise_bf16=False))
    assert out_f32.shape == (N, C_OUT, H, W)
    err_f32 = float(jnp.max(jnp.abs(out_f32 - ref)))
    assert err_f32 < 1e-2, f"f32 pointwise mismatch vs reference: {err_f32}"

    # bf16 pointwise path (default): native MXU rate on v6e/v7x, half pw VMEM.
    out_bf16 = jax.block_until_ready(basic_block(x, p1, p2, pointwise_bf16=True))
    assert out_bf16.shape == (N, C_OUT, H, W)
    assert bool(jnp.all(jnp.isfinite(out_bf16)))
    err_bf16 = float(jnp.max(jnp.abs(out_bf16 - ref)))
    assert err_bf16 < 2.5e-2, f"bf16 pointwise mismatch vs reference: {err_bf16}"

    print("KERNEL_OK")
</pallas_src>

<mosaic_0001>
module attributes {stable_mosaic.version = 11 : i64} {
  func.func @_basic_block_kernel(%arg0: i32, %arg1: memref<32x128xf32, #tpu.memory_space<vmem>>, %arg2: memref<9x128xf32, #tpu.memory_space<vmem>>, %arg3: memref<1x128xf32, #tpu.memory_space<vmem>>, %arg4: memref<128x128xf32, #tpu.memory_space<vmem>>, %arg5: memref<1x128xf32, #tpu.memory_space<vmem>>, %arg6: memref<9x128xf32, #tpu.memory_space<vmem>>, %arg7: memref<1x128xf32, #tpu.memory_space<vmem>>, %arg8: memref<128x256xf32, #tpu.memory_space<vmem>>, %arg9: memref<1x256xf32, #tpu.memory_space<vmem>>, %arg10: memref<32x256xf32, #tpu.memory_space<vmem>>) attributes {dimension_semantics = [#tpu.dimension_semantics<parallel>], iteration_bounds = array<i64: 1>, scalar_prefetch = 0 : i64, scratch_operands = 0 : i64, tpu.core_type = #tpu.core_type<tc>, window_params = [{transform_indices = @transform_0, window_bounds = array<i64: 32, 128>}, {pipeline_mode = #tpu.pipeline_mode<synchronous>, transform_indices = @transform_1, window_bounds = array<i64: 9, 128>}, {pipeline_mode = #tpu.pipeline_mode<synchronous>, transform_indices = @transform_2, window_bounds = array<i64: 1, 128>}, {pipeline_mode = #tpu.pipeline_mode<synchronous>, transform_indices = @transform_3, window_bounds = array<i64: 128, 128>}, {pipeline_mode = #tpu.pipeline_mode<synchronous>, transform_indices = @transform_4, window_bounds = array<i64: 1, 128>}, {pipeline_mode = #tpu.pipeline_mode<synchronous>, transform_indices = @transform_5, window_bounds = array<i64: 9, 128>}, {pipeline_mode = #tpu.pipeline_mode<synchronous>, transform_indices = @transform_6, window_bounds = array<i64: 1, 128>}, {pipeline_mode = #tpu.pipeline_mode<synchronous>, transform_indices = @transform_7, window_bounds = array<i64: 128, 256>}, {pipeline_mode = #tpu.pipeline_mode<synchronous>, transform_indices = @transform_8, window_bounds = array<i64: 1, 256>}, {transform_indices = @transform_9, window_bounds = array<i64: 32, 256>}]} {
    %c0 = arith.constant 0 : index
    %c0_0 = arith.constant 0 : index
    %0 = vector.load %arg1[%c0, %c0_0] : memref<32x128xf32, #tpu.memory_space<vmem>>, vector<32x128xf32>
    %1 = tpu.iota {dimensions = array<i32: 0>} : vector<32x128xi32>
    %c16_i32 = arith.constant 16 : i32
    %c0_i32 = arith.constant 0 : i32
    %2 = arith.cmpi eq, %c16_i32, %c0_i32 : i32
    %c1_i32 = arith.constant 1 : i32
    %3 = arith.select %2, %c1_i32, %c16_i32 : i32
    %4 = vector.broadcast %3 : i32 to vector<32x128xi32>
    %5 = arith.remsi %1, %4 : vector<32x128xi32>
    %c0_i32_1 = arith.constant 0 : i32
    %6 = vector.broadcast %c0_i32_1 : i32 to vector<32x128xi32>
    %7 = arith.cmpi ne, %5, %6 : vector<32x128xi32>
    %c0_i32_2 = arith.constant 0 : i32
    %8 = vector.broadcast %c0_i32_2 : i32 to vector<32x128xi32>
    %9 = arith.cmpi slt, %5, %8 : vector<32x128xi32>
    %c0_i32_3 = arith.constant 0 : i32
    %10 = arith.cmpi slt, %3, %c0_i32_3 : i32
    %11 = vector.broadcast %10 : i1 to vector<32x128xi1>
    %12 = vector.broadcast %11 : vector<32x128xi1> to vector<32x128xi1>
    %13 = arith.xori %9, %12 : vector<32x128xi1>
    %14 = arith.andi %13, %7 : vector<32x128xi1>
    %15 = vector.broadcast %3 : i32 to vector<32x128xi32>
    %16 = arith.addi %5, %15 : vector<32x128xi32>
    %17 = arith.select %14, %16, %5 : vector<32x128xi1>, vector<32x128xi32>
    %18 = tpu.iota {dimensions = array<i32: 1>} : vector<32x128xi32>
    %c8_i32 = arith.constant 8 : i32
    %19 = vector.broadcast %c8_i32 : i32 to vector<32x128xi32>
    %20 = arith.cmpi sge, %18, %19 : vector<32x128xi32>
    %c120_i32 = arith.constant 120 : i32
    %21 = vector.broadcast %c120_i32 : i32 to vector<32x128xi32>
    %22 = arith.cmpi slt, %18, %21 : vector<32x128xi32>
    %c1_i32_4 = arith.constant 1 : i32
    %23 = vector.broadcast %c1_i32_4 : i32 to vector<32x128xi32>
    %24 = arith.cmpi sge, %17, %23 : vector<32x128xi32>
    %c15_i32 = arith.constant 15 : i32
    %25 = vector.broadcast %c15_i32 : i32 to vector<32x128xi32>
    %26 = arith.cmpi slt, %17, %25 : vector<32x128xi32>
    %c1_i32_5 = arith.constant 1 : i32
    %27 = tpu.dynamic_rotate %0 by %c1_i32_5 dim 0 : vector<32x128xf32>, i32 -> vector<32x128xf32>
    %cst = arith.constant 0.000000e+00 : f32
    %28 = vector.broadcast %cst : f32 to vector<32x128xf32>
    %29 = arith.select %24, %27, %28 : vector<32x128xi1>, vector<32x128xf32>
    %c8_i32_6 = arith.constant 8 : i32
    %30 = tpu.dynamic_rotate %29 by %c8_i32_6 dim 1 : vector<32x128xf32>, i32 -> vector<32x128xf32>
    %cst_7 = arith.constant 0.000000e+00 : f32
    %31 = vector.broadcast %cst_7 : f32 to vector<32x128xf32>
    %32 = arith.select %20, %30, %31 : vector<32x128xi1>, vector<32x128xf32>
    %c0_8 = arith.constant 0 : index
    %c0_9 = arith.constant 0 : index
    %33 = vector.load %arg2[%c0_8, %c0_9] : memref<9x128xf32, #tpu.memory_space<vmem>>, vector<1x128xf32>
    %34 = vector.broadcast %33 : vector<1x128xf32> to vector<32x128xf32>
    %35 = arith.mulf %32, %34 : vector<32x128xf32>
    %c1 = arith.constant 1 : index
    %c0_10 = arith.constant 0 : index
    %36 = vector.load %arg2[%c1, %c0_10] : memref<9x128xf32, #tpu.memory_space<vmem>>, vector<1x128xf32>
    %37 = vector.broadcast %36 : vector<1x128xf32> to vector<32x128xf32>
    %38 = arith.mulf %29, %37 : vector<32x128xf32>
    %39 = arith.addf %35, %38 : vector<32x128xf32>
    %c120_i32_11 = arith.constant 120 : i32
    %40 = tpu.dynamic_rotate %29 by %c120_i32_11 dim 1 : vector<32x128xf32>, i32 -> vector<32x128xf32>
    %cst_12 = arith.constant 0.000000e+00 : f32
    %41 = vector.broadcast %cst_12 : f32 to vector<32x128xf32>
    %42 = arith.select %22, %40, %41 : vector<32x128xi1>, vector<32x128xf32>
    %c2 = arith.constant 2 : index
    %c0_13 = arith.constant 0 : index
    %43 = vector.load %arg2[%c2, %c0_13] : memref<9x128xf32, #tpu.memory_space<vmem>>, vector<1x128xf32>
    %44 = vector.broadcast %43 : vector<1x128xf32> to vector<32x128xf32>
    %45 = arith.mulf %42, %44 : vector<32x128xf32>
    %46 = arith.addf %39, %45 : vector<32x128xf32>
    %c8_i32_14 = arith.constant 8 : i32
    %47 = tpu.dynamic_rotate %0 by %c8_i32_14 dim 1 : vector<32x128xf32>, i32 -> vector<32x128xf32>
    %cst_15 = arith.constant 0.000000e+00 : f32
    %48 = vector.broadcast %cst_15 : f32 to vector<32x128xf32>
    %49 = arith.select %20, %47, %48 : vector<32x128xi1>, vector<32x128xf32>
    %c3 = arith.constant 3 : index
    %c0_16 = arith.constant 0 : index
    %50 = vector.load %arg2[%c3, %c0_16] : memref<9x128xf32, #tpu.memory_space<vmem>>, vector<1x128xf32>
    %51 = vector.broadcast %50 : vector<1x128xf32> to vector<32x128xf32>
    %52 = arith.mulf %49, %51 : vector<32x128xf32>
    %53 = arith.addf %46, %52 : vector<32x128xf32>
    %c4 = arith.constant 4 : index
    %c0_17 = arith.constant 0 : index
    %54 = vector.load %arg2[%c4, %c0_17] : memref<9x128xf32, #tpu.memory_space<vmem>>, vector<1x128xf32>
    %55 = vector.broadcast %54 : vector<1x128xf32> to vector<32x128xf32>
    %56 = arith.mulf %0, %55 : vector<32x128xf32>
    %57 = arith.addf %53, %56 : vector<32x128xf32>
    %c120_i32_18 = arith.constant 120 : i32
    %58 = tpu.dynamic_rotate %0 by %c120_i32_18 dim 1 : vector<32x128xf32>, i32 -> vector<32x128xf32>
    %cst_19 = arith.constant 0.000000e+00 : f32
    %59 = vector.broadcast %cst_19 : f32 to vector<32x128xf32>
    %60 = arith.select %22, %58, %59 : vector<32x128xi1>, vector<32x128xf32>
    %c5 = arith.constant 5 : index
    %c0_20 = arith.constant 0 : index
    %61 = vector.load %arg2[%c5, %c0_20] : memref<9x128xf32, #tpu.memory_space<vmem>>, vector<1x128xf32>
    %62 = vector.broadcast %61 : vector<1x128xf32> to vector<32x128xf32>
    %63 = arith.mulf %60, %62 : vector<32x128xf32>
    %64 = arith.addf %57, %63 : vector<32x128xf32>
    %c31_i32 = arith.constant 31 : i32
    %65 = tpu.dynamic_rotate %0 by %c31_i32 dim 0 : vector<32x128xf32>, i32 -> vector<32x128xf32>
    %cst_21 = arith.constant 0.000000e+00 : f32
    %66 = vector.broadcast %cst_21 : f32 to vector<32x128xf32>
    %67 = arith.select %26, %65, %66 : vector<32x128xi1>, vector<32x128xf32>
    %c8_i32_22 = arith.constant 8 : i32
    %68 = tpu.dynamic_rotate %67 by %c8_i32_22 dim 1 : vector<32x128xf32>, i32 -> vector<32x128xf32>
    %cst_23 = arith.constant 0.000000e+00 : f32
    %69 = vector.broadcast %cst_23 : f32 to vector<32x128xf32>
    %70 = arith.select %20, %68, %69 : vector<32x128xi1>, vector<32x128xf32>
    %c6 = arith.constant 6 : index
    %c0_24 = arith.constant 0 : index
    %71 = vector.load %arg2[%c6, %c0_24] : memref<9x128xf32, #tpu.memory_space<vmem>>, vector<1x128xf32>
    %72 = vector.broadcast %71 : vector<1x128xf32> to vector<32x128xf32>
    %73 = arith.mulf %70, %72 : vector<32x128xf32>
    %74 = arith.addf %64, %73 : vector<32x128xf32>
    %c7 = arith.constant 7 : index
    %c0_25 = arith.constant 0 : index
    %75 = vector.load %arg2[%c7, %c0_25] : memref<9x128xf32, #tpu.memory_space<vmem>>, vector<1x128xf32>
    %76 = vector.broadcast %75 : vector<1x128xf32> to vector<32x128xf32>
    %77 = arith.mulf %67, %76 : vector<32x128xf32>
    %78 = arith.addf %74, %77 : vector<32x128xf32>
    %c120_i32_26 = arith.constant 120 : i32
    %79 = tpu.dynamic_rotate %67 by %c120_i32_26 dim 1 : vector<32x128xf32>, i32 -> vector<32x128xf32>
    %cst_27 = arith.constant 0.000000e+00 : f32
    %80 = vector.broadcast %cst_27 : f32 to vector<32x128xf32>
    %81 = arith.select %22, %79, %80 : vector<32x128xi1>, vector<32x128xf32>
    %c8 = arith.constant 8 : index
    %c0_28 = arith.constant 0 : index
    %82 = vector.load %arg2[%c8, %c0_28] : memref<9x128xf32, #tpu.memory_space<vmem>>, vector<1x128xf32>
    %83 = vector.broadcast %82 : vector<1x128xf32> to vector<32x128xf32>
    %84 = arith.mulf %81, %83 : vector<32x128xf32>
    %85 = arith.addf %78, %84 : vector<32x128xf32>
    %c0_29 = arith.constant 0 : index
    %c0_30 = arith.constant 0 : index
    %86 = vector.load %arg3[%c0_29, %c0_30] : memref<1x128xf32, #tpu.memory_space<vmem>>, vector<1x128xf32>
    %87 = vector.broadcast %86 : vector<1x128xf32> to vector<32x128xf32>
    %88 = arith.addf %85, %87 : vector<32x128xf32>
    %cst_31 = arith.constant 1.000000e-01 : f32
    %89 = vector.broadcast %cst_31 : f32 to vector<32x128xf32>
    %90 = arith.mulf %89, %88 : vector<32x128xf32>
    %91 = arith.maximumf %88, %90 : vector<32x128xf32>
    %c0_32 = arith.constant 0 : index
    %c0_33 = arith.constant 0 : index
    %92 = vector.load %arg4[%c0_32, %c0_33] : memref<128x128xf32, #tpu.memory_space<vmem>>, vector<128x128xf32>
    %cst_34 = arith.constant dense<0.000000e+00> : vector<32x128xf32>
    %93 = tpu.matmul %91, %92, %cst_34 {dimension_numbers = #tpu.dot_dimension_numbers<[1], [0], [0], [1], [0, 0, 1, 1], [], []>} : vector<32x128xf32>, vector<128x128xf32>, vector<32x128xf32> -> vector<32x128xf32>
    %c0_35 = arith.constant 0 : index
    %c0_36 = arith.constant 0 : index
    %94 = vector.load %arg5[%c0_35, %c0_36] : memref<1x128xf32, #tpu.memory_space<vmem>>, vector<1x128xf32>
    %95 = vector.broadcast %94 : vector<1x128xf32> to vector<32x128xf32>
    %96 = arith.addf %93, %95 : vector<32x128xf32>
    %cst_37 = arith.constant 1.000000e-01 : f32
    %97 = vector.broadcast %cst_37 : f32 to vector<32x128xf32>
    %98 = arith.mulf %97, %96 : vector<32x128xf32>
    %99 = arith.maximumf %96, %98 : vector<32x128xf32>
    %100 = arith.addf %99, %0 : vector<32x128xf32>
    %c1_i32_38 = arith.constant 1 : i32
    %101 = tpu.dynamic_rotate %100 by %c1_i32_38 dim 0 : vector<32x128xf32>, i32 -> vector<32x128xf32>
    %cst_39 = arith.constant 0.000000e+00 : f32
    %102 = vector.broadcast %cst_39 : f32 to vector<32x128xf32>
    %103 = arith.select %24, %101, %102 : vector<32x128xi1>, vector<32x128xf32>
    %c8_i32_40 = arith.constant 8 : i32
    %104 = tpu.dynamic_rotate %103 by %c8_i32_40 dim 1 : vector<32x128xf32>, i32 -> vector<32x128xf32>
    %cst_41 = arith.constant 0.000000e+00 : f32
    %105 = vector.broadcast %cst_41 : f32 to vector<32x128xf32>
    %106 = arith.select %20, %104, %105 : vector<32x128xi1>, vector<32x128xf32>
    %c0_42 = arith.constant 0 : index
    %c0_43 = arith.constant 0 : index
    %107 = vector.load %arg6[%c0_42, %c0_43] : memref<9x128xf32, #tpu.memory_space<vmem>>, vector<1x128xf32>
    %108 = vector.broadcast %107 : vector<1x128xf32> to vector<32x128xf32>
    %109 = arith.mulf %106, %108 : vector<32x128xf32>
    %c1_44 = arith.constant 1 : index
    %c0_45 = arith.constant 0 : index
    %110 = vector.load %arg6[%c1_44, %c0_45] : memref<9x128xf32, #tpu.memory_space<vmem>>, vector<1x128xf32>
    %111 = vector.broadcast %110 : vector<1x128xf32> to vector<32x128xf32>
    %112 = arith.mulf %103, %111 : vector<32x128xf32>
    %113 = arith.addf %109, %112 : vector<32x128xf32>
    %c120_i32_46 = arith.constant 120 : i32
    %114 = tpu.dynamic_rotate %103 by %c120_i32_46 dim 1 : vector<32x128xf32>, i32 -> vector<32x128xf32>
    %cst_47 = arith.constant 0.000000e+00 : f32
    %115 = vector.broadcast %cst_47 : f32 to vector<32x128xf32>
    %116 = arith.select %22, %114, %115 : vector<32x128xi1>, vector<32x128xf32>
    %c2_48 = arith.constant 2 : index
    %c0_49 = arith.constant 0 : index
    %117 = vector.load %arg6[%c2_48, %c0_49] : memref<9x128xf32, #tpu.memory_space<vmem>>, vector<1x128xf32>
    %118 = vector.broadcast %117 : vector<1x128xf32> to vector<32x128xf32>
    %119 = arith.mulf %116, %118 : vector<32x128xf32>
    %120 = arith.addf %113, %119 : vector<32x128xf32>
    %c8_i32_50 = arith.constant 8 : i32
    %121 = tpu.dynamic_rotate %100 by %c8_i32_50 dim 1 : vector<32x128xf32>, i32 -> vector<32x128xf32>
    %cst_51 = arith.constant 0.000000e+00 : f32
    %122 = vector.broadcast %cst_51 : f32 to vector<32x128xf32>
    %123 = arith.select %20, %121, %122 : vector<32x128xi1>, vector<32x128xf32>
    %c3_52 = arith.constant 3 : index
    %c0_53 = arith.constant 0 : index
    %124 = vector.load %arg6[%c3_52, %c0_53] : memref<9x128xf32, #tpu.memory_space<vmem>>, vector<1x128xf32>
    %125 = vector.broadcast %124 : vector<1x128xf32> to vector<32x128xf32>
    %126 = arith.mulf %123, %125 : vector<32x128xf32>
    %127 = arith.addf %120, %126 : vector<32x128xf32>
    %c4_54 = arith.constant 4 : index
    %c0_55 = arith.constant 0 : index
    %128 = vector.load %arg6[%c4_54, %c0_55] : memref<9x128xf32, #tpu.memory_space<vmem>>, vector<1x128xf32>
    %129 = vector.broadcast %128 : vector<1x128xf32> to vector<32x128xf32>
    %130 = arith.mulf %100, %129 : vector<32x128xf32>
    %131 = arith.addf %127, %130 : vector<32x128xf32>
    %c120_i32_56 = arith.constant 120 : i32
    %132 = tpu.dynamic_rotate %100 by %c120_i32_56 dim 1 : vector<32x128xf32>, i32 -> vector<32x128xf32>
    %cst_57 = arith.constant 0.000000e+00 : f32
    %133 = vector.broadcast %cst_57 : f32 to vector<32x128xf32>
    %134 = arith.select %22, %132, %133 : vector<32x128xi1>, vector<32x128xf32>
    %c5_58 = arith.constant 5 : index
    %c0_59 = arith.constant 0 : index
    %135 = vector.load %arg6[%c5_58, %c0_59] : memref<9x128xf32, #tpu.memory_space<vmem>>, vector<1x128xf32>
    %136 = vector.broadcast %135 : vector<1x128xf32> to vector<32x128xf32>
    %137 = arith.mulf %134, %136 : vector<32x128xf32>
    %138 = arith.addf %131, %137 : vector<32x128xf32>
    %c31_i32_60 = arith.constant 31 : i32
    %139 = tpu.dynamic_rotate %100 by %c31_i32_60 dim 0 : vector<32x128xf32>, i32 -> vector<32x128xf32>
    %cst_61 = arith.constant 0.000000e+00 : f32
    %140 = vector.broadcast %cst_61 : f32 to vector<32x128xf32>
    %141 = arith.select %26, %139, %140 : vector<32x128xi1>, vector<32x128xf32>
    %c8_i32_62 = arith.constant 8 : i32
    %142 = tpu.dynamic_rotate %141 by %c8_i32_62 dim 1 : vector<32x128xf32>, i32 -> vector<32x128xf32>
    %cst_63 = arith.constant 0.000000e+00 : f32
    %143 = vector.broadcast %cst_63 : f32 to vector<32x128xf32>
    %144 = arith.select %20, %142, %143 : vector<32x128xi1>, vector<32x128xf32>
    %c6_64 = arith.constant 6 : index
    %c0_65 = arith.constant 0 : index
    %145 = vector.load %arg6[%c6_64, %c0_65] : memref<9x128xf32, #tpu.memory_space<vmem>>, vector<1x128xf32>
    %146 = vector.broadcast %145 : vector<1x128xf32> to vector<32x128xf32>
    %147 = arith.mulf %144, %146 : vector<32x128xf32>
    %148 = arith.addf %138, %147 : vector<32x128xf32>
    %c7_66 = arith.constant 7 : index
    %c0_67 = arith.constant 0 : index
    %149 = vector.load %arg6[%c7_66, %c0_67] : memref<9x128xf32, #tpu.memory_space<vmem>>, vector<1x128xf32>
    %150 = vector.broadcast %149 : vector<1x128xf32> to vector<32x128xf32>
    %151 = arith.mulf %141, %150 : vector<32x128xf32>
    %152 = arith.addf %148, %151 : vector<32x128xf32>
    %c120_i32_68 = arith.constant 120 : i32
    %153 = tpu.dynamic_rotate %141 by %c120_i32_68 dim 1 : vector<32x128xf32>, i32 -> vector<32x128xf32>
    %cst_69 = arith.constant 0.000000e+00 : f32
    %154 = vector.broadcast %cst_69 : f32 to vector<32x128xf32>
    %155 = arith.select %22, %153, %154 : vector<32x128xi1>, vector<32x128xf32>
    %c8_70 = arith.constant 8 : index
    %c0_71 = arith.constant 0 : index
    %156 = vector.load %arg6[%c8_70, %c0_71] : memref<9x128xf32, #tpu.memory_space<vmem>>, vector<1x128xf32>
    %157 = vector.broadcast %156 : vector<1x128xf32> to vector<32x128xf32>
    %158 = arith.mulf %155, %157 : vector<32x128xf32>
    %159 = arith.addf %152, %158 : vector<32x128xf32>
    %c0_72 = arith.constant 0 : index
    %c0_73 = arith.constant 0 : index
    %160 = vector.load %arg7[%c0_72, %c0_73] : memref<1x128xf32, #tpu.memory_space<vmem>>, vector<1x128xf32>
    %161 = vector.broadcast %160 : vector<1x128xf32> to vector<32x128xf32>
    %162 = arith.addf %159, %161 : vector<32x128xf32>
    %cst_74 = arith.constant 1.000000e-01 : f32
    %163 = vector.broadcast %cst_74 : f32 to vector<32x128xf32>
    %164 = arith.mulf %163, %162 : vector<32x128xf32>
    %165 = arith.maximumf %162, %164 : vector<32x128xf32>
    %c0_75 = arith.constant 0 : index
    %c0_76 = arith.constant 0 : index
    %166 = vector.load %arg8[%c0_75, %c0_76] : memref<128x256xf32, #tpu.memory_space<vmem>>, vector<128x256xf32>
    %cst_77 = arith.constant dense<0.000000e+00> : vector<32x256xf32>
    %167 = tpu.matmul %165, %166, %cst_77 {dimension_numbers = #tpu.dot_dimension_numbers<[1], [0], [0], [1], [0, 0, 1, 1], [], []>} : vector<32x128xf32>, vector<128x256xf32>, vector<32x256xf32> -> vector<32x256xf32>
    %c0_78 = arith.constant 0 : index
    %c0_79 = arith.constant 0 : index
    %168 = vector.load %arg9[%c0_78, %c0_79] : memref<1x256xf32, #tpu.memory_space<vmem>>, vector<1x256xf32>
    %169 = vector.broadcast %168 : vector<1x256xf32> to vector<32x256xf32>
    %170 = arith.addf %167, %169 : vector<32x256xf32>
    %cst_80 = arith.constant 1.000000e-01 : f32
    %171 = vector.broadcast %cst_80 : f32 to vector<32x256xf32>
    %172 = arith.mulf %171, %170 : vector<32x256xf32>
    %173 = arith.maximumf %170, %172 : vector<32x256xf32>
    %c0_81 = arith.constant 0 : index
    %c0_82 = arith.constant 0 : index
    %174 = vector.load %arg10[%c0_81, %c0_82] : memref<32x256xf32, #tpu.memory_space<vmem>>, vector<32x256xf32>
    tpu.vector_store %arg10[%c0_81, %c0_82], %173 {strides = array<i32>} : memref<32x256xf32, #tpu.memory_space<vmem>>, vector<32x256xf32>,
    return
  }
  func.func @transform_0(%arg0: i32) -> (i32, i32) {
    %c0_i32 = arith.constant 0 : i32
    %c0_i32_0 = arith.constant 0 : i32
    return %arg0, %c0_i32 : i32, i32
  }
  func.func @transform_1(%arg0: i32) -> (i32, i32) {
    %c0_i32 = arith.constant 0 : i32
    %c0_i32_0 = arith.constant 0 : i32
    %c0_i32_1 = arith.constant 0 : i32
    return %c0_i32, %c0_i32_0 : i32, i32
  }
  func.func @transform_2(%arg0: i32) -> (i32, i32) {
    %c0_i32 = arith.constant 0 : i32
    %c0_i32_0 = arith.constant 0 : i32
    %c0_i32_1 = arith.constant 0 : i32
    return %c0_i32, %c0_i32_0 : i32, i32
  }
  func.func @transform_3(%arg0: i32) -> (i32, i32) {
    %c0_i32 = arith.constant 0 : i32
    %c0_i32_0 = arith.constant 0 : i32
    %c0_i32_1 = arith.constant 0 : i32
    return %c0_i32, %c0_i32_0 : i32, i32
  }
  func.func @transform_4(%arg0: i32) -> (i32, i32) {
    %c0_i32 = arith.constant 0 : i32
    %c0_i32_0 = arith.constant 0 : i32
    %c0_i32_1 = arith.constant 0 : i32
    return %c0_i32, %c0_i32_0 : i32, i32
  }
  func.func @transform_5(%arg0: i32) -> (i32, i32) {
    %c0_i32 = arith.constant 0 : i32
    %c0_i32_0 = arith.constant 0 : i32
    %c0_i32_1 = arith.constant 0 : i32
    return %c0_i32, %c0_i32_0 : i32, i32
  }
  func.func @transform_6(%arg0: i32) -> (i32, i32) {
    %c0_i32 = arith.constant 0 : i32
    %c0_i32_0 = arith.constant 0 : i32
    %c0_i32_1 = arith.constant 0 : i32
    return %c0_i32, %c0_i32_0 : i32, i32
  }
  func.func @transform_7(%arg0: i32) -> (i32, i32) {
    %c0_i32 = arith.constant 0 : i32
    %c0_i32_0 = arith.constant 0 : i32
    %c0_i32_1 = arith.constant 0 : i32
    return %c0_i32, %c0_i32_0 : i32, i32
  }
  func.func @transform_8(%arg0: i32) -> (i32, i32) {
    %c0_i32 = arith.constant 0 : i32
    %c0_i32_0 = arith.constant 0 : i32
    %c0_i32_1 = arith.constant 0 : i32
    return %c0_i32, %c0_i32_0 : i32, i32
  }
  func.func @transform_9(%arg0: i32) -> (i32, i32) {
    %c0_i32 = arith.constant 0 : i32
    %c0_i32_0 = arith.constant 0 : i32
    return %arg0, %c0_i32 : i32, i32
  }
}

module attributes {stable_mosaic.version = 11 : i64} {
  func.func @_basic_block_kernel(%arg0: i32, %arg1: memref<32x128xf32, #tpu.memory_space<vmem>>, %arg2: memref<9x128xf32, #tpu.memory_space<vmem>>, %arg3: memref<1x128xf32, #tpu.memory_space<vmem>>, %arg4: memref<128x128xf32, #tpu.memory_space<vmem>>, %arg5: memref<1x128xf32, #tpu.memory_space<vmem>>, %arg6: memref<9x128xf32, #tpu.memory_space<vmem>>, %arg7: memref<1x128xf32, #tpu.memory_space<vmem>>, %arg8: memref<128x256xf32, #tpu.memory_space<vmem>>, %arg9: memref<1x256xf32, #tpu.memory_space<vmem>>, %arg10: memref<32x256xf32, #tpu.memory_space<vmem>>) attributes {dimension_semantics = [#tpu.dimension_semantics<parallel>], iteration_bounds = array<i64: 1>, scalar_prefetch = 0 : i64, scratch_operands = 0 : i64, tpu.core_type = #tpu.core_type<tc>, window_params = [{transform_indices = @transform_0, window_bounds = array<i64: 32, 128>}, {pipeline_mode = #tpu.pipeline_mode<synchronous>, transform_indices = @transform_1, window_bounds = array<i64: 9, 128>}, {pipeline_mode = #tpu.pipeline_mode<synchronous>, transform_indices = @transform_2, window_bounds = array<i64: 1, 128>}, {pipeline_mode = #tpu.pipeline_mode<synchronous>, transform_indices = @transform_3, window_bounds = array<i64: 128, 128>}, {pipeline_mode = #tpu.pipeline_mode<synchronous>, transform_indices = @transform_4, window_bounds = array<i64: 1, 128>}, {pipeline_mode = #tpu.pipeline_mode<synchronous>, transform_indices = @transform_5, window_bounds = array<i64: 9, 128>}, {pipeline_mode = #tpu.pipeline_mode<synchronous>, transform_indices = @transform_6, window_bounds = array<i64: 1, 128>}, {pipeline_mode = #tpu.pipeline_mode<synchronous>, transform_indices = @transform_7, window_bounds = array<i64: 128, 256>}, {pipeline_mode = #tpu.pipeline_mode<synchronous>, transform_indices = @transform_8, window_bounds = array<i64: 1, 256>}, {transform_indices = @transform_9, window_bounds = array<i64: 32, 256>}]} {
    %c0 = arith.constant 0 : index
    %c0_0 = arith.constant 0 : index
    %0 = vector.load %arg1[%c0, %c0_0] : memref<32x128xf32, #tpu.memory_space<vmem>>, vector<32x128xf32>
    %1 = tpu.iota {dimensions = array<i32: 0>} : vector<32x128xi32>
    %c16_i32 = arith.constant 16 : i32
    %c0_i32 = arith.constant 0 : i32
    %2 = arith.cmpi eq, %c16_i32, %c0_i32 : i32
    %c1_i32 = arith.constant 1 : i32
    %3 = arith.select %2, %c1_i32, %c16_i32 : i32
    %4 = vector.broadcast %3 : i32 to vector<32x128xi32>
    %5 = arith.remsi %1, %4 : vector<32x128xi32>
    %c0_i32_1 = arith.constant 0 : i32
    %6 = vector.broadcast %c0_i32_1 : i32 to vector<32x128xi32>
    %7 = arith.cmpi ne, %5, %6 : vector<32x128xi32>
    %c0_i32_2 = arith.constant 0 : i32
    %8 = vector.broadcast %c0_i32_2 : i32 to vector<32x128xi32>
    %9 = arith.cmpi slt, %5, %8 : vector<32x128xi32>
    %c0_i32_3 = arith.constant 0 : i32
    %10 = arith.cmpi slt, %3, %c0_i32_3 : i32
    %11 = vector.broadcast %10 : i1 to vector<32x128xi1>
    %12 = vector.broadcast %11 : vector<32x128xi1> to vector<32x128xi1>
    %13 = arith.xori %9, %12 : vector<32x128xi1>
    %14 = arith.andi %13, %7 : vector<32x128xi1>
    %15 = vector.broadcast %3 : i32 to vector<32x128xi32>
    %16 = arith.addi %5, %15 : vector<32x128xi32>
    %17 = arith.select %14, %16, %5 : vector<32x128xi1>, vector<32x128xi32>
    %18 = tpu.iota {dimensions = array<i32: 1>} : vector<32x128xi32>
    %c8_i32 = arith.constant 8 : i32
    %19 = vector.broadcast %c8_i32 : i32 to vector<32x128xi32>
    %20 = arith.cmpi sge, %18, %19 : vector<32x128xi32>
    %c120_i32 = arith.constant 120 : i32
    %21 = vector.broadcast %c120_i32 : i32 to vector<32x128xi32>
    %22 = arith.cmpi slt, %18, %21 : vector<32x128xi32>
    %c1_i32_4 = arith.constant 1 : i32
    %23 = vector.broadcast %c1_i32_4 : i32 to vector<32x128xi32>
    %24 = arith.cmpi sge, %17, %23 : vector<32x128xi32>
    %c15_i32 = arith.constant 15 : i32
    %25 = vector.broadcast %c15_i32 : i32 to vector<32x128xi32>
    %26 = arith.cmpi slt, %17, %25 : vector<32x128xi32>
    %c1_i32_5 = arith.constant 1 : i32
    %27 = tpu.dynamic_rotate %0 by %c1_i32_5 dim 0 : vector<32x128xf32>, i32 -> vector<32x128xf32>
    %cst = arith.constant 0.000000e+00 : f32
    %28 = vector.broadcast %cst : f32 to vector<32x128xf32>
    %29 = arith.select %24, %27, %28 : vector<32x128xi1>, vector<32x128xf32>
    %c8_i32_6 = arith.constant 8 : i32
    %30 = tpu.dynamic_rotate %29 by %c8_i32_6 dim 1 : vector<32x128xf32>, i32 -> vector<32x128xf32>
    %cst_7 = arith.constant 0.000000e+00 : f32
    %31 = vector.broadcast %cst_7 : f32 to vector<32x128xf32>
    %32 = arith.select %20, %30, %31 : vector<32x128xi1>, vector<32x128xf32>
    %c0_8 = arith.constant 0 : index
    %c0_9 = arith.constant 0 : index
    %33 = vector.load %arg2[%c0_8, %c0_9] : memref<9x128xf32, #tpu.memory_space<vmem>>, vector<1x128xf32>
    %34 = vector.broadcast %33 : vector<1x128xf32> to vector<32x128xf32>
    %35 = arith.mulf %32, %34 : vector<32x128xf32>
    %c1 = arith.constant 1 : index
    %c0_10 = arith.constant 0 : index
    %36 = vector.load %arg2[%c1, %c0_10] : memref<9x128xf32, #tpu.memory_space<vmem>>, vector<1x128xf32>
    %37 = vector.broadcast %36 : vector<1x128xf32> to vector<32x128xf32>
    %38 = arith.mulf %29, %37 : vector<32x128xf32>
    %39 = arith.addf %35, %38 : vector<32x128xf32>
    %c120_i32_11 = arith.constant 120 : i32
    %40 = tpu.dynamic_rotate %29 by %c120_i32_11 dim 1 : vector<32x128xf32>, i32 -> vector<32x128xf32>
    %cst_12 = arith.constant 0.000000e+00 : f32
    %41 = vector.broadcast %cst_12 : f32 to vector<32x128xf32>
    %42 = arith.select %22, %40, %41 : vector<32x128xi1>, vector<32x128xf32>
    %c2 = arith.constant 2 : index
    %c0_13 = arith.constant 0 : index
    %43 = vector.load %arg2[%c2, %c0_13] : memref<9x128xf32, #tpu.memory_space<vmem>>, vector<1x128xf32>
    %44 = vector.broadcast %43 : vector<1x128xf32> to vector<32x128xf32>
    %45 = arith.mulf %42, %44 : vector<32x128xf32>
    %46 = arith.addf %39, %45 : vector<32x128xf32>
    %c8_i32_14 = arith.constant 8 : i32
    %47 = tpu.dynamic_rotate %0 by %c8_i32_14 dim 1 : vector<32x128xf32>, i32 -> vector<32x128xf32>
    %cst_15 = arith.constant 0.000000e+00 : f32
    %48 = vector.broadcast %cst_15 : f32 to vector<32x128xf32>
    %49 = arith.select %20, %47, %48 : vector<32x128xi1>, vector<32x128xf32>
    %c3 = arith.constant 3 : index
    %c0_16 = arith.constant 0 : index
    %50 = vector.load %arg2[%c3, %c0_16] : memref<9x128xf32, #tpu.memory_space<vmem>>, vector<1x128xf32>
    %51 = vector.broadcast %50 : vector<1x128xf32> to vector<32x128xf32>
    %52 = arith.mulf %49, %51 : vector<32x128xf32>
    %53 = arith.addf %46, %52 : vector<32x128xf32>
    %c4 = arith.constant 4 : index
    %c0_17 = arith.constant 0 : index
    %54 = vector.load %arg2[%c4, %c0_17] : memref<9x128xf32, #tpu.memory_space<vmem>>, vector<1x128xf32>
    %55 = vector.broadcast %54 : vector<1x128xf32> to vector<32x128xf32>
    %56 = arith.mulf %0, %55 : vector<32x128xf32>
    %57 = arith.addf %53, %56 : vector<32x128xf32>
    %c120_i32_18 = arith.constant 120 : i32
    %58 = tpu.dynamic_rotate %0 by %c120_i32_18 dim 1 : vector<32x128xf32>, i32 -> vector<32x128xf32>
    %cst_19 = arith.constant 0.000000e+00 : f32
    %59 = vector.broadcast %cst_19 : f32 to vector<32x128xf32>
    %60 = arith.select %22, %58, %59 : vector<32x128xi1>, vector<32x128xf32>
    %c5 = arith.constant 5 : index
    %c0_20 = arith.constant 0 : index
    %61 = vector.load %arg2[%c5, %c0_20] : memref<9x128xf32, #tpu.memory_space<vmem>>, vector<1x128xf32>
    %62 = vector.broadcast %61 : vector<1x128xf32> to vector<32x128xf32>
    %63 = arith.mulf %60, %62 : vector<32x128xf32>
    %64 = arith.addf %57, %63 : vector<32x128xf32>
    %c31_i32 = arith.constant 31 : i32
    %65 = tpu.dynamic_rotate %0 by %c31_i32 dim 0 : vector<32x128xf32>, i32 -> vector<32x128xf32>
    %cst_21 = arith.constant 0.000000e+00 : f32
    %66 = vector.broadcast %cst_21 : f32 to vector<32x128xf32>
    %67 = arith.select %26, %65, %66 : vector<32x128xi1>, vector<32x128xf32>
    %c8_i32_22 = arith.constant 8 : i32
    %68 = tpu.dynamic_rotate %67 by %c8_i32_22 dim 1 : vector<32x128xf32>, i32 -> vector<32x128xf32>
    %cst_23 = arith.constant 0.000000e+00 : f32
    %69 = vector.broadcast %cst_23 : f32 to vector<32x128xf32>
    %70 = arith.select %20, %68, %69 : vector<32x128xi1>, vector<32x128xf32>
    %c6 = arith.constant 6 : index
    %c0_24 = arith.constant 0 : index
    %71 = vector.load %arg2[%c6, %c0_24] : memref<9x128xf32, #tpu.memory_space<vmem>>, vector<1x128xf32>
    %72 = vector.broadcast %71 : vector<1x128xf32> to vector<32x128xf32>
    %73 = arith.mulf %70, %72 : vector<32x128xf32>
    %74 = arith.addf %64, %73 : vector<32x128xf32>
    %c7 = arith.constant 7 : index
    %c0_25 = arith.constant 0 : index
    %75 = vector.load %arg2[%c7, %c0_25] : memref<9x128xf32, #tpu.memory_space<vmem>>, vector<1x128xf32>
    %76 = vector.broadcast %75 : vector<1x128xf32> to vector<32x128xf32>
    %77 = arith.mulf %67, %76 : vector<32x128xf32>
    %78 = arith.addf %74, %77 : vector<32x128xf32>
    %c120_i32_26 = arith.constant 120 : i32
    %79 = tpu.dynamic_rotate %67 by %c120_i32_26 dim 1 : vector<32x128xf32>, i32 -> vector<32x128xf32>
    %cst_27 = arith.constant 0.000000e+00 : f32
    %80 = vector.broadcast %cst_27 : f32 to vector<32x128xf32>
    %81 = arith.select %22, %79, %80 : vector<32x128xi1>, vector<32x128xf32>
    %c8 = arith.constant 8 : index
    %c0_28 = arith.constant 0 : index
    %82 = vector.load %arg2[%c8, %c0_28] : memref<9x128xf32, #tpu.memory_space<vmem>>, vector<1x128xf32>
    %83 = vector.broadcast %82 : vector<1x128xf32> to vector<32x128xf32>
    %84 = arith.mulf %81, %83 : vector<32x128xf32>
    %85 = arith.addf %78, %84 : vector<32x128xf32>
    %c0_29 = arith.constant 0 : index
    %c0_30 = arith.constant 0 : index
    %86 = vector.load %arg3[%c0_29, %c0_30] : memref<1x128xf32, #tpu.memory_space<vmem>>, vector<1x128xf32>
    %87 = vector.broadcast %86 : vector<1x128xf32> to vector<32x128xf32>
    %88 = arith.addf %85, %87 : vector<32x128xf32>
    %cst_31 = arith.constant 1.000000e-01 : f32
    %89 = vector.broadcast %cst_31 : f32 to vector<32x128xf32>
    %90 = arith.mulf %89, %88 : vector<32x128xf32>
    %91 = arith.maximumf %88, %90 : vector<32x128xf32>
    %c0_32 = arith.constant 0 : index
    %c0_33 = arith.constant 0 : index
    %92 = vector.load %arg4[%c0_32, %c0_33] : memref<128x128xf32, #tpu.memory_space<vmem>>, vector<128x128xf32>
    %cst_34 = arith.constant dense<0.000000e+00> : vector<32x128xf32>
    %93 = tpu.matmul %91, %92, %cst_34 {dimension_numbers = #tpu.dot_dimension_numbers<[1], [0], [0], [1], [0, 0, 1, 1], [], []>} : vector<32x128xf32>, vector<128x128xf32>, vector<32x128xf32> -> vector<32x128xf32>
    %c0_35 = arith.constant 0 : index
    %c0_36 = arith.constant 0 : index
    %94 = vector.load %arg5[%c0_35, %c0_36] : memref<1x128xf32, #tpu.memory_space<vmem>>, vector<1x128xf32>
    %95 = vector.broadcast %94 : vector<1x128xf32> to vector<32x128xf32>
    %96 = arith.addf %93, %95 : vector<32x128xf32>
    %cst_37 = arith.constant 1.000000e-01 : f32
    %97 = vector.broadcast %cst_37 : f32 to vector<32x128xf32>
    %98 = arith.mulf %97, %96 : vector<32x128xf32>
    %99 = arith.maximumf %96, %98 : vector<32x128xf32>
    %100 = arith.addf %99, %0 : vector<32x128xf32>
    %c1_i32_38 = arith.constant 1 : i32
    %101 = tpu.dynamic_rotate %100 by %c1_i32_38 dim 0 : vector<32x128xf32>, i32 -> vector<32x128xf32>
    %cst_39 = arith.constant 0.000000e+00 : f32
    %102 = vector.broadcast %cst_39 : f32 to vector<32x128xf32>
    %103 = arith.select %24, %101, %102 : vector<32x128xi1>, vector<32x128xf32>
    %c8_i32_40 = arith.constant 8 : i32
    %104 = tpu.dynamic_rotate %103 by %c8_i32_40 dim 1 : vector<32x128xf32>, i32 -> vector<32x128xf32>
    %cst_41 = arith.constant 0.000000e+00 : f32
    %105 = vector.broadcast %cst_41 : f32 to vector<32x128xf32>
    %106 = arith.select %20, %104, %105 : vector<32x128xi1>, vector<32x128xf32>
    %c0_42 = arith.constant 0 : index
    %c0_43 = arith.constant 0 : index
    %107 = vector.load %arg6[%c0_42, %c0_43] : memref<9x128xf32, #tpu.memory_space<vmem>>, vector<1x128xf32>
    %108 = vector.broadcast %107 : vector<1x128xf32> to vector<32x128xf32>
    %109 = arith.mulf %106, %108 : vector<32x128xf32>
    %c1_44 = arith.constant 1 : index
    %c0_45 = arith.constant 0 : index
    %110 = vector.load %arg6[%c1_44, %c0_45] : memref<9x128xf32, #tpu.memory_space<vmem>>, vector<1x128xf32>
    %111 = vector.broadcast %110 : vector<1x128xf32> to vector<32x128xf32>
    %112 = arith.mulf %103, %111 : vector<32x128xf32>
    %113 = arith.addf %109, %112 : vector<32x128xf32>
    %c120_i32_46 = arith.constant 120 : i32
    %114 = tpu.dynamic_rotate %103 by %c120_i32_46 dim 1 : vector<32x128xf32>, i32 -> vector<32x128xf32>
    %cst_47 = arith.constant 0.000000e+00 : f32
    %115 = vector.broadcast %cst_47 : f32 to vector<32x128xf32>
    %116 = arith.select %22, %114, %115 : vector<32x128xi1>, vector<32x128xf32>
    %c2_48 = arith.constant 2 : index
    %c0_49 = arith.constant 0 : index
    %117 = vector.load %arg6[%c2_48, %c0_49] : memref<9x128xf32, #tpu.memory_space<vmem>>, vector<1x128xf32>
    %118 = vector.broadcast %117 : vector<1x128xf32> to vector<32x128xf32>
    %119 = arith.mulf %116, %118 : vector<32x128xf32>
    %120 = arith.addf %113, %119 : vector<32x128xf32>
    %c8_i32_50 = arith.constant 8 : i32
    %121 = tpu.dynamic_rotate %100 by %c8_i32_50 dim 1 : vector<32x128xf32>, i32 -> vector<32x128xf32>
    %cst_51 = arith.constant 0.000000e+00 : f32
    %122 = vector.broadcast %cst_51 : f32 to vector<32x128xf32>
    %123 = arith.select %20, %121, %122 : vector<32x128xi1>, vector<32x128xf32>
    %c3_52 = arith.constant 3 : index
    %c0_53 = arith.constant 0 : index
    %124 = vector.load %arg6[%c3_52, %c0_53] : memref<9x128xf32, #tpu.memory_space<vmem>>, vector<1x128xf32>
    %125 = vector.broadcast %124 : vector<1x128xf32> to vector<32x128xf32>
    %126 = arith.mulf %123, %125 : vector<32x128xf32>
    %127 = arith.addf %120, %126 : vector<32x128xf32>
    %c4_54 = arith.constant 4 : index
    %c0_55 = arith.constant 0 : index
    %128 = vector.load %arg6[%c4_54, %c0_55] : memref<9x128xf32, #tpu.memory_space<vmem>>, vector<1x128xf32>
    %129 = vector.broadcast %128 : vector<1x128xf32> to vector<32x128xf32>
    %130 = arith.mulf %100, %129 : vector<32x128xf32>
    %131 = arith.addf %127, %130 : vector<32x128xf32>
    %c120_i32_56 = arith.constant 120 : i32
    %132 = tpu.dynamic_rotate %100 by %c120_i32_56 dim 1 : vector<32x128xf32>, i32 -> vector<32x128xf32>
    %cst_57 = arith.constant 0.000000e+00 : f32
    %133 = vector.broadcast %cst_57 : f32 to vector<32x128xf32>
    %134 = arith.select %22, %132, %133 : vector<32x128xi1>, vector<32x128xf32>
    %c5_58 = arith.constant 5 : index
    %c0_59 = arith.constant 0 : index
    %135 = vector.load %arg6[%c5_58, %c0_59] : memref<9x128xf32, #tpu.memory_space<vmem>>, vector<1x128xf32>
    %136 = vector.broadcast %135 : vector<1x128xf32> to vector<32x128xf32>
    %137 = arith.mulf %134, %136 : vector<32x128xf32>
    %138 = arith.addf %131, %137 : vector<32x128xf32>
    %c31_i32_60 = arith.constant 31 : i32
    %139 = tpu.dynamic_rotate %100 by %c31_i32_60 dim 0 : vector<32x128xf32>, i32 -> vector<32x128xf32>
    %cst_61 = arith.constant 0.000000e+00 : f32
    %140 = vector.broadcast %cst_61 : f32 to vector<32x128xf32>
    %141 = arith.select %26, %139, %140 : vector<32x128xi1>, vector<32x128xf32>
    %c8_i32_62 = arith.constant 8 : i32
    %142 = tpu.dynamic_rotate %141 by %c8_i32_62 dim 1 : vector<32x128xf32>, i32 -> vector<32x128xf32>
    %cst_63 = arith.constant 0.000000e+00 : f32
    %143 = vector.broadcast %cst_63 : f32 to vector<32x128xf32>
    %144 = arith.select %20, %142, %143 : vector<32x128xi1>, vector<32x128xf32>
    %c6_64 = arith.constant 6 : index
    %c0_65 = arith.constant 0 : index
    %145 = vector.load %arg6[%c6_64, %c0_65] : memref<9x128xf32, #tpu.memory_space<vmem>>, vector<1x128xf32>
    %146 = vector.broadcast %145 : vector<1x128xf32> to vector<32x128xf32>
    %147 = arith.mulf %144, %146 : vector<32x128xf32>
    %148 = arith.addf %138, %147 : vector<32x128xf32>
    %c7_66 = arith.constant 7 : index
    %c0_67 = arith.constant 0 : index
    %149 = vector.load %arg6[%c7_66, %c0_67] : memref<9x128xf32, #tpu.memory_space<vmem>>, vector<1x128xf32>
    %150 = vector.broadcast %149 : vector<1x128xf32> to vector<32x128xf32>
    %151 = arith.mulf %141, %150 : vector<32x128xf32>
    %152 = arith.addf %148, %151 : vector<32x128xf32>
    %c120_i32_68 = arith.constant 120 : i32
    %153 = tpu.dynamic_rotate %141 by %c120_i32_68 dim 1 : vector<32x128xf32>, i32 -> vector<32x128xf32>
    %cst_69 = arith.constant 0.000000e+00 : f32
    %154 = vector.broadcast %cst_69 : f32 to vector<32x128xf32>
    %155 = arith.select %22, %153, %154 : vector<32x128xi1>, vector<32x128xf32>
    %c8_70 = arith.constant 8 : index
    %c0_71 = arith.constant 0 : index
    %156 = vector.load %arg6[%c8_70, %c0_71] : memref<9x128xf32, #tpu.memory_space<vmem>>, vector<1x128xf32>
    %157 = vector.broadcast %156 : vector<1x128xf32> to vector<32x128xf32>
    %158 = arith.mulf %155, %157 : vector<32x128xf32>
    %159 = arith.addf %152, %158 : vector<32x128xf32>
    %c0_72 = arith.constant 0 : index
    %c0_73 = arith.constant 0 : index
    %160 = vector.load %arg7[%c0_72, %c0_73] : memref<1x128xf32, #tpu.memory_space<vmem>>, vector<1x128xf32>
    %161 = vector.broadcast %160 : vector<1x128xf32> to vector<32x128xf32>
    %162 = arith.addf %159, %161 : vector<32x128xf32>
    %cst_74 = arith.constant 1.000000e-01 : f32
    %163 = vector.broadcast %cst_74 : f32 to vector<32x128xf32>
    %164 = arith.mulf %163, %162 : vector<32x128xf32>
    %165 = arith.maximumf %162, %164 : vector<32x128xf32>
    %c0_75 = arith.constant 0 : index
    %c0_76 = arith.constant 0 : index
    %166 = vector.load %arg8[%c0_75, %c0_76] : memref<128x256xf32, #tpu.memory_space<vmem>>, vector<128x256xf32>
    %cst_77 = arith.constant dense<0.000000e+00> : vector<32x256xf32>
    %167 = tpu.matmul %165, %166, %cst_77 {dimension_numbers = #tpu.dot_dimension_numbers<[1], [0], [0], [1], [0, 0, 1, 1], [], []>} : vector<32x128xf32>, vector<128x256xf32>, vector<32x256xf32> -> vector<32x256xf32>
    %c0_78 = arith.constant 0 : index
    %c0_79 = arith.constant 0 : index
    %168 = vector.load %arg9[%c0_78, %c0_79] : memref<1x256xf32, #tpu.memory_space<vmem>>, vector<1x256xf32>
    %169 = vector.broadcast %168 : vector<1x256xf32> to vector<32x256xf32>
    %170 = arith.addf %167, %169 : vector<32x256xf32>
    %cst_80 = arith.constant 1.000000e-01 : f32
    %171 = vector.broadcast %cst_80 : f32 to vector<32x256xf32>
    %172 = arith.mulf %171, %170 : vector<32x256xf32>
    %173 = arith.maximumf %170, %172 : vector<32x256xf32>
    %c0_81 = arith.constant 0 : index
    %c0_82 = arith.constant 0 : index
    %174 = vector.load %arg10[%c0_81, %c0_82] : memref<32x256xf32, #tpu.memory_space<vmem>>, vector<32x256xf32>
    tpu.vector_store %arg10[%c0_81, %c0_82], %173 {strides = array<i32>} : memref<32x256xf32, #tpu.memory_space<vmem>>, vector<32x256xf32>,
    return
  }
  func.func @transform_0(%arg0: i32) -> (i32, i32) {
    %c0_i32 = arith.constant 0 : i32
    %c0_i32_0 = arith.constant 0 : i32
    return %arg0, %c0_i32 : i32, i32
  }
  func.func @transform_1(%arg0: i32) -> (i32, i32) {
    %c0_i32 = arith.constant 0 : i32
    %c0_i32_0 = arith.constant 0 : i32
    %c0_i32_1 = arith.constant 0 : i32
    return %c0_i32, %c0_i32_0 : i32, i32
  }
  func.func @transform_2(%arg0: i32) -> (i32, i32) {
    %c0_i32 = arith.constant 0 : i32
    %c0_i32_0 = arith.constant 0 : i32
    %c0_i32_1 = arith.constant 0 : i32
    return %c0_i32, %c0_i32_0 : i32, i32
  }
  func.func @transform_3(%arg0: i32) -> (i32, i32) {
    %c0_i32 = arith.constant 0 : i32
    %c0_i32_0 = arith.constant 0 : i32
    %c0_i32_1 = arith.constant 0 : i32
    return %c0_i32, %c0_i32_0 : i32, i32
  }
  func.func @transform_4(%arg0: i32) -> (i32, i32) {
    %c0_i32 = arith.constant 0 : i32
    %c0_i32_0 = arith.constant 0 : i32
    %c0_i32_1 = arith.constant 0 : i32
    return %c0_i32, %c0_i32_0 : i32, i32
  }
  func.func @transform_5(%arg0: i32) -> (i32, i32) {
    %c0_i32 = arith.constant 0 : i32
    %c0_i32_0 = arith.constant 0 : i32
    %c0_i32_1 = arith.constant 0 : i32
    return %c0_i32, %c0_i32_0 : i32, i32
  }
  func.func @transform_6(%arg0: i32) -> (i32, i32) {
    %c0_i32 = arith.constant 0 : i32
    %c0_i32_0 = arith.constant 0 : i32
    %c0_i32_1 = arith.constant 0 : i32
    return %c0_i32, %c0_i32_0 : i32, i32
  }
  func.func @transform_7(%arg0: i32) -> (i32, i32) {
    %c0_i32 = arith.constant 0 : i32
    %c0_i32_0 = arith.constant 0 : i32
    %c0_i32_1 = arith.constant 0 : i32
    return %c0_i32, %c0_i32_0 : i32, i32
  }
  func.func @transform_8(%arg0: i32) -> (i32, i32) {
    %c0_i32 = arith.constant 0 : i32
    %c0_i32_0 = arith.constant 0 : i32
    %c0_i32_1 = arith.constant 0 : i32
    return %c0_i32, %c0_i32_0 : i32, i32
  }
  func.func @transform_9(%arg0: i32) -> (i32, i32) {
    %c0_i32 = arith.constant 0 : i32
    %c0_i32_0 = arith.constant 0 : i32
    return %arg0, %c0_i32 : i32, i32
  }
}

</mosaic_0001>

<llo_original>
// kernel: tpu_custom_call.1
$region0: #{tpu_custom_call.1}
  #allocation0 [shape = 'u32[]', space=smem, size = 0x4, offset = 0x4, fixed_abs, tag = 'smem constant byte address 0x4 - core index']
  #allocation1 [shape = 'u32[144,128]{1,0:T(1,128)}', space=vmem, size = 0x12000, scoped, tag = 'internal scratch']
  %s0 = inlined_call_operand.hbm [shape: f32[32,128], index: 0, kind: input, shape index: {}]
  %s1 = inlined_call_operand.hbm [shape: f32[9,128], index: 1, kind: input, shape index: {}]
  %s2 = inlined_call_operand.hbm [shape: f32[1,128], index: 2, kind: input, shape index: {}]
  %s3 = inlined_call_operand.hbm [shape: f32[128,128], index: 3, kind: input, shape index: {}]
  %s4 = inlined_call_operand.hbm [shape: f32[1,128], index: 4, kind: input, shape index: {}]
  %s5 = inlined_call_operand.vmem [shape: f32[9,128], index: 5, kind: input, shape index: {}]
  %s6 = inlined_call_operand.vmem [shape: f32[1,128], index: 6, kind: input, shape index: {}]
  %s7 = inlined_call_operand.hbm [shape: f32[128,256], index: 7, kind: input, shape index: {}]
  %s8 = inlined_call_operand.vmem [shape: f32[1,256], index: 8, kind: input, shape index: {}]
  %s9 = inlined_call_operand.hbm [shape: f32[32,256], index: 9, kind: output, shape index: {}]
  %s10 = sld [smem:[#allocation0]]
  $region70: #{tpu_custom_call.1} parent=0
    _
  %s12 = ssub.s32 1, %s10
  %s13 = scalar_select 0, %s12, %s10
  $region1: #{tpu_custom_call.1} parent=0
    #allocation2 [shape = 'u8[16384]{0}', space=vmem, size = 0x4000, scoped, tag = 'input window, operand 0, single buffered']
    #allocation3 [shape = 's32[1]{0}', space=sflag, size = 0x4, scoped, tag = 'scoped memory for tpu_custom_call.1']
    #allocation4 [shape = 's32[1]{0}', space=sflag, size = 0x4, scoped, tag = 'scoped memory for tpu_custom_call.1']
    #allocation5 [shape = 'u8[8192]{0}', space=vmem, size = 0x2000, scoped, tag = 'input window, operand 1, single buffered']
    #allocation6 [shape = 's32[1]{0}', space=sflag, size = 0x4, scoped, tag = 'scoped memory for tpu_custom_call.1']
    #allocation7 [shape = 'u8[512]{0}', space=vmem, size = 0x400, scoped, tag = 'input window, operand 2, single buffered']
    #allocation8 [shape = 'u8[65536]{0}', space=vmem, size = 0x10000, scoped, tag = 'input window, operand 3, single buffered']
    #allocation9 [shape = 's32[1]{0}', space=sflag, size = 0x4, scoped, tag = 'scoped memory for tpu_custom_call.1']
    #allocation10 [shape = 'u8[512]{0}', space=vmem, size = 0x400, scoped, tag = 'input window, operand 4, single buffered']
    #allocation11 [shape = 'u8[131072]{0}', space=vmem, size = 0x20000, scoped, tag = 'input window, operand 7, single buffered']
    #allocation12 [shape = 's32[1]{0}', space=sflag, size = 0x4, scoped, tag = 'scoped memory for tpu_custom_call.1']
    #allocation13 [shape = 'u8[32768]{0}', space=vmem, size = 0x8000, scoped, tag = 'output window, operand 0, single buffered']
    %14 = vsyncpa [#allocation3], 0
    %15 = vsyncpa [#allocation6], 0
    %16 = vsyncpa [#allocation9], 0
    %17 = vsyncpa [#allocation12], 0
    %18 = vsyncpa [#allocation4], 0
    // Predicated region
    $region2: #{tpu_custom_call.1} parent=1 // pred_check
      _
    $region3: #{tpu_custom_call.1} parent=1 // pred_check_branch
      %20 = sbr.rel (0) target = $region5
    $region4: #{tpu_custom_call.1} parent=1 // pred_region
      %s22 = ssub.s32 512, 512
      %23 = vsyncadd [#allocation3], %s22
      %s24 = sshll.u32 [#allocation2], 4
      %s25 = int_to_ptr.vmem [resolvable:$true] %s24
      %30 = dma.hbm_to_vmem [thread:$0]  %s0, 512, %s25, [#allocation3], 128, 128, 8
    $region5: #{tpu_custom_call.1} parent=1 // pred_fallthru
      _
    // Predicated region
    $region6: #{tpu_custom_call.1} parent=1 // pred_check
      _
    $region7: #{tpu_custom_call.1} parent=1 // pred_check_branch
      %32 = sbr.rel (0) target = $region9
    $region8: #{tpu_custom_call.1} parent=1 // pred_region
      %s34 = ssub.s32 256, 256
      %35 = vsyncadd [#allocation6], %s34
      %s36 = sshll.u32 [#allocation5], 4
      %s37 = int_to_ptr.vmem [resolvable:$true] %s36
      %42 = dma.hbm_to_vmem [thread:$0]  %s1, 256, %s37, [#allocation6], 128, 128, 8
    $region9: #{tpu_custom_call.1} parent=1 // pred_fallthru
      _
    // Predicated region
    $region10: #{tpu_custom_call.1} parent=1 // pred_check
      _
    $region11: #{tpu_custom_call.1} parent=1 // pred_check_branch
      %44 = sbr.rel (0) target = $region13
    $region12: #{tpu_custom_call.1} parent=1 // pred_region
      %s46 = ssub.s32 16, 16
      %47 = vsyncadd [#allocation6], %s46
      %s49 = sshll.u32 [#allocation7], 4
      %s50 = int_to_ptr.vmem [resolvable:$true] %s49
      %52 = dma.hbm_to_vmem [thread:$0]  %s2, 16, %s50, [#allocation6]
    $region13: #{tpu_custom_call.1} parent=1 // pred_fallthru
      _
    // Predicated region
    $region14: #{tpu_custom_call.1} parent=1 // pred_check
      _
    $region15: #{tpu_custom_call.1} parent=1 // pred_check_branch
      %54 = sbr.rel (0) target = $region17
    $region16: #{tpu_custom_call.1} parent=1 // pred_region
      %s56 = ssub.s32 2048, 2048
      %57 = vsyncadd [#allocation9], %s56
      %s58 = sshll.u32 [#allocation8], 4
      %s59 = int_to_ptr.vmem [resolvable:$true] %s58
      %64 = dma.hbm_to_vmem [thread:$0]  %s3, 2048, %s59, [#allocation9], 128, 128, 8
    $region17: #{tpu_custom_call.1} parent=1 // pred_fallthru
      _
    // Predicated region
    $region18: #{tpu_custom_call.1} parent=1 // pred_check
      _
    $region19: #{tpu_custom_call.1} parent=1 // pred_check_branch
      %66 = sbr.rel (0) target = $region21
    $region20: #{tpu_custom_call.1} parent=1 // pred_region
      %s68 = ssub.s32 16, 16
      %69 = vsyncadd [#allocation9], %s68
      %s71 = sshll.u32 [#allocation10], 4
      %s72 = int_to_ptr.vmem [resolvable:$true] %s71
      %74 = dma.hbm_to_vmem [thread:$0]  %s4, 16, %s72, [#allocation9]
    $region21: #{tpu_custom_call.1} parent=1 // pred_fallthru
      _
    // Predicated region
    $region22: #{tpu_custom_call.1} parent=1 // pred_check
      _
    $region23: #{tpu_custom_call.1} parent=1 // pred_check_branch
      %76 = sbr.rel (0) target = $region25
    $region24: #{tpu_custom_call.1} parent=1 // pred_region
      _
    $region25: #{tpu_custom_call.1} parent=1 // pred_fallthru
      _
    // Predicated region
    $region26: #{tpu_custom_call.1} parent=1 // pred_check
      _
    $region27: #{tpu_custom_call.1} parent=1 // pred_check_branch
      %78 = sbr.rel (0) target = $region29
    $region28: #{tpu_custom_call.1} parent=1 // pred_region
      _
    $region29: #{tpu_custom_call.1} parent=1 // pred_fallthru
      _
    // Predicated region
    $region30: #{tpu_custom_call.1} parent=1 // pred_check
      _
    $region31: #{tpu_custom_call.1} parent=1 // pred_check_branch
      %80 = sbr.rel (0) target = $region33
    $region32: #{tpu_custom_call.1} parent=1 // pred_region
      %s82 = ssub.s32 4096, 4096
      %83 = vsyncadd [#allocation12], %s82
      %s84 = sshll.u32 [#allocation11], 4
      %s85 = int_to_ptr.vmem [resolvable:$true] %s84
      %90 = dma.hbm_to_vmem [thread:$0]  %s7, 4096, %s85, [#allocation12], 256, 256, 16
    $region33: #{tpu_custom_call.1} parent=1 // pred_fallthru
      _
    // Predicated region
    $region34: #{tpu_custom_call.1} parent=1 // pred_check
      _
    $region35: #{tpu_custom_call.1} parent=1 // pred_check_branch
      %92 = sbr.rel (0) target = $region37
    $region36: #{tpu_custom_call.1} parent=1 // pred_region
      _
    $region37: #{tpu_custom_call.1} parent=1 // pred_fallthru
      _
    // Predicated region
    $region38: #{tpu_custom_call.1} parent=1 // pred_check
      _
    $region39: #{tpu_custom_call.1} parent=1 // pred_check_branch
      %94 = sbr.rel (0) target = $region41
    $region40: #{tpu_custom_call.1} parent=1 // pred_region
      %95 = dma.done [#allocation3], 512
    $region41: #{tpu_custom_call.1} parent=1 // pred_fallthru
      _
    // Predicated region
    $region42: #{tpu_custom_call.1} parent=1 // pred_check
      _
    $region43: #{tpu_custom_call.1} parent=1 // pred_check_branch
      %97 = sbr.rel (0) target = $region45
    $region44: #{tpu_custom_call.1} parent=1 // pred_region
      %98 = dma.done [#allocation6], 256
    $region45: #{tpu_custom_call.1} parent=1 // pred_fallthru
      _
    // Predicated region
    $region46: #{tpu_custom_call.1} parent=1 // pred_check
      _
    $region47: #{tpu_custom_call.1} parent=1 // pred_check_branch
      %100 = sbr.rel (0) target = $region49
    $region48: #{tpu_custom_call.1} parent=1 // pred_region
      %101 = dma.done [#allocation6], 16
    $region49: #{tpu_custom_call.1} parent=1 // pred_fallthru
      _
    // Predicated region
    $region50: #{tpu_custom_call.1} parent=1 // pred_check
      _
    $region51: #{tpu_custom_call.1} parent=1 // pred_check_branch
      %103 = sbr.rel (0) target = $region53
    $region52: #{tpu_custom_call.1} parent=1 // pred_region
      %104 = dma.done [#allocation9], 2048
    $region53: #{tpu_custom_call.1} parent=1 // pred_fallthru
      _
    // Predicated region
    $region54: #{tpu_custom_call.1} parent=1 // pred_check
      _
    $region55: #{tpu_custom_call.1} parent=1 // pred_check_branch
      %106 = sbr.rel (0) target = $region57
    $region56: #{tpu_custom_call.1} parent=1 // pred_region
      %107 = dma.done [#allocation9], 16
    $region57: #{tpu_custom_call.1} parent=1 // pred_fallthru
      _
    // Predicated region
    $region58: #{tpu_custom_call.1} parent=1 // pred_check
      _
    $region59: #{tpu_custom_call.1} parent=1 // pred_check_branch
      %109 = sbr.rel (0) target = $region61
    $region60: #{tpu_custom_call.1} parent=1 // pred_region
      %110 = dma.done [#allocation12], 4096
    $region61: #{tpu_custom_call.1} parent=1 // pred_fallthru
      _
    %v111 = vld [vmem:[#allocation2] sm:$0xff]
    %v112 = vld [vmem:[#allocation2 + $0x8] sm:$0xff]
    %v113 = vld [vmem:[#allocation2 + $0x10] sm:$0xff]
    %v114 = vld [vmem:[#allocation2 + $0x18] sm:$0xff]
    %v115 = vlaneseq
    %v116 = vshrl.u32 %v115, 7
    %v117 = vadd.s32 %v116, 8
    %v118 = vadd.s32 %v116, 16
    %v119 = vadd.s32 %v116, 24
    %vm120 = vcmp.lt.s32.totalorder %v116, 0
    %v121 = vsub.s32 0, %v116
    %v122 = vsel %vm120, %v121, %v116
    %v123 = vshrl.u32 %v122, 4
    %v124 = vand.u32 %v122, 15
    %v125 = vsub.s32 0, %v124
    %v126 = vsel %vm120, %v125, %v124
    %vm127 = vcmp.lt.s32.totalorder %v117, 0
    %v128 = vsub.s32 0, %v117
    %v129 = vsel %vm127, %v128, %v117
    %v130 = vshrl.u32 %v129, 4
    %v131 = vand.u32 %v129, 15
    %v132 = vsub.s32 0, %v131
    %v133 = vsel %vm127, %v132, %v131
    %vm134 = vcmp.lt.s32.totalorder %v118, 0
    %v135 = vsub.s32 0, %v118
    %v136 = vsel %vm134, %v135, %v118
    %v137 = vshrl.u32 %v136, 4
    %v138 = vand.u32 %v136, 15
    %v139 = vsub.s32 0, %v138
    %v140 = vsel %vm134, %v139, %v138
    %vm141 = vcmp.lt.s32.totalorder %v119, 0
    %v142 = vsub.s32 0, %v119
    %v143 = vsel %vm141, %v142, %v119
    %v144 = vshrl.u32 %v143, 4
    %v145 = vand.u32 %v143, 15
    %v146 = vsub.s32 0, %v145
    %v147 = vsel %vm141, %v146, %v145
    %vm148 = vcmp.ne.s32.totalorder %v126, 0
    %vm149 = vcmp.ne.s32.totalorder %v133, 0
    %vm150 = vcmp.ne.s32.totalorder %v140, 0
    %vm151 = vcmp.ne.s32.totalorder %v147, 0
    %vm152 = vcmp.lt.s32.totalorder %v126, 0
    %vm153 = vcmp.lt.s32.totalorder %v133, 0
    %vm154 = vcmp.lt.s32.totalorder %v140, 0
    %vm155 = vcmp.lt.s32.totalorder %v147, 0
    %vm156 = vmand %vm152, %vm148
    %vm157 = vmand %vm153, %vm149
    %vm158 = vmand %vm154, %vm150
    %vm159 = vmand %vm155, %vm151
    %v160 = vadd.s32 %v126, 16
    %v161 = vadd.s32 %v133, 16
    %v162 = vadd.s32 %v140, 16
    %v163 = vadd.s32 %v147, 16
    %v164 = vsel %vm156, %v160, %v126
    %v165 = vsel %vm157, %v161, %v133
    %v166 = vsel %vm158, %v162, %v140
    %v167 = vsel %vm159, %v163, %v147
    %v168 = vlaneseq
    %v169 = vand.u32 %v168, 127
    %vm170 = vcmp.ge.s32.totalorder %v169, 8
    %vm171 = vcmp.lt.s32.totalorder %v169, 120
    %vm172 = vcmp.ge.s32.totalorder %v164, 1
    %vm173 = vcmp.ge.s32.totalorder %v165, 1
    %vm174 = vcmp.ge.s32.totalorder %v166, 1
    %vm175 = vcmp.ge.s32.totalorder %v167, 1
    %vm176 = vcmp.lt.s32.totalorder %v164, 15
    %vm177 = vcmp.lt.s32.totalorder %v165, 15
    %vm178 = vcmp.lt.s32.totalorder %v166, 15
    %vm179 = vcmp.lt.s32.totalorder %v167, 15
    %v180 = vrot.slane %v111, 7
    %v181 = vrot.slane %v112, 7
    %v182 = vrot.slane %v113, 7
    %v183 = vrot.slane %v114, 7
    %vm184 = vcmp.lt.s32.totalorder %v116, 1
    %v185 = vsel %vm184, %v182, %v183
    %v186 = vsel %vm184, %v181, %v182
    %v187 = vsel %vm184, %v180, %v181
    %v188 = vsel %vm184, %v183, %v180
    %v189 = vsel %vm172, %v188, 0.0
    %v190 = vsel %vm173, %v187, 0.0
    %v191 = vsel %vm174, %v186, 0.0
    %v192 = vsel %vm175, %v185, 0.0
    %193 = vrot.lane.b32.xlu0 %v189, 8
    %v194 = vpop.permute.xlu0 %193
    %195 = vrot.lane.b32.xlu0 %v190, 8
    %v196 = vpop.permute.xlu0 %195
    %197 = vrot.lane.b32.xlu0 %v191, 8
    %v198 = vpop.permute.xlu0 %197
    %199 = vrot.lane.b32.xlu0 %v192, 8
    %v200 = vpop.permute.xlu0 %199
    %v201 = vsel %vm170, %v194, 0.0
    %v202 = vsel %vm170, %v196, 0.0
    %v203 = vsel %vm170, %v198, 0.0
    %v204 = vsel %vm170, %v200, 0.0
    %v205 = vld [vmem:[#allocation5] sm:$0x1]
    %v206 = vlaneseq
    %v207 = vshrl.u32 %v206, 7
    %v208 = vsub.s32 0, %v207
    %v209 = vrot.slane %v205, %v208
    %v210 = vmul.f32 %v201, %v209
    %v211 = vmul.f32 %v202, %v209
    %v212 = vmul.f32 %v203, %v209
    %v213 = vmul.f32 %v204, %v209
    %v214 = vld [vmem:[#allocation5 + $0x1] sm:$0x1]
    %v215 = vlaneseq
    %v216 = vshrl.u32 %v215, 7
    %v217 = vsub.s32 0, %v216
    %v218 = vrot.slane %v214, %v217
    %v219 = vmul.f32 %v189, %v218
    %v220 = vmul.f32 %v190, %v218
    %v221 = vmul.f32 %v191, %v218
    %v222 = vmul.f32 %v192, %v218
    %v223 = vadd.f32 %v210, %v219
    %v224 = vadd.f32 %v211, %v220
    %v225 = vadd.f32 %v212, %v221
    %v226 = vadd.f32 %v213, %v222
    %227 = vrot.lane.b32.xlu0 %v189, 120
    %v228 = vpop.permute.xlu0 %227
    %229 = vrot.lane.b32.xlu0 %v190, 120
    %v230 = vpop.permute.xlu0 %229
    %231 = vrot.lane.b32.xlu0 %v191, 120
    %v232 = vpop.permute.xlu0 %231
    %233 = vrot.lane.b32.xlu0 %v192, 120
    %v234 = vpop.permute.xlu0 %233
    %v235 = vsel %vm171, %v228, 0.0
    %v236 = vsel %vm171, %v230, 0.0
    %v237 = vsel %vm171, %v232, 0.0
    %v238 = vsel %vm171, %v234, 0.0
    %v239 = vld [vmem:[#allocation5 + $0x2] sm:$0x1]
    %v240 = vlaneseq
    %v241 = vshrl.u32 %v240, 7
    %v242 = vsub.s32 0, %v241
    %v243 = vrot.slane %v239, %v242
    %v244 = vmul.f32 %v235, %v243
    %v245 = vmul.f32 %v236, %v243
    %v246 = vmul.f32 %v237, %v243
    %v247 = vmul.f32 %v238, %v243
    %v248 = vadd.f32 %v223, %v244
    %v249 = vadd.f32 %v224, %v245
    %v250 = vadd.f32 %v225, %v246
    %v251 = vadd.f32 %v226, %v247
    %252 = vrot.lane.b32.xlu0 %v111, 8
    %v253 = vpop.permute.xlu0 %252
    %254 = vrot.lane.b32.xlu0 %v112, 8
    %v255 = vpop.permute.xlu0 %254
    %256 = vrot.lane.b32.xlu0 %v113, 8
    %v257 = vpop.permute.xlu0 %256
    %258 = vrot.lane.b32.xlu0 %v114, 8
    %v259 = vpop.permute.xlu0 %258
    %v260 = vsel %vm170, %v253, 0.0
    %v261 = vsel %vm170, %v255, 0.0
    %v262 = vsel %vm170, %v257, 0.0
    %v263 = vsel %vm170, %v259, 0.0
    %v264 = vld [vmem:[#allocation5 + $0x3] sm:$0x1]
    %v265 = vlaneseq
    %v266 = vshrl.u32 %v265, 7
    %v267 = vsub.s32 0, %v266
    %v268 = vrot.slane %v264, %v267
    %v269 = vmul.f32 %v260, %v268
    %v270 = vmul.f32 %v261, %v268
    %v271 = vmul.f32 %v262, %v268
    %v272 = vmul.f32 %v263, %v268
    %v273 = vadd.f32 %v248, %v269
    %v274 = vadd.f32 %v249, %v270
    %v275 = vadd.f32 %v250, %v271
    %v276 = vadd.f32 %v251, %v272
    %v277 = vld [vmem:[#allocation5 + $0x4] sm:$0x1]
    %v278 = vlaneseq
    %v279 = vshrl.u32 %v278, 7
    %v280 = vsub.s32 0, %v279
    %v281 = vrot.slane %v277, %v280
    %v282 = vmul.f32 %v111, %v281
    %v283 = vmul.f32 %v112, %v281
    %v284 = vmul.f32 %v113, %v281
    %v285 = vmul.f32 %v114, %v281
    %v286 = vadd.f32 %v273, %v282
    %v287 = vadd.f32 %v274, %v283
    %v288 = vadd.f32 %v275, %v284
    %v289 = vadd.f32 %v276, %v285
    %290 = vrot.lane.b32.xlu0 %v111, 120
    %v291 = vpop.permute.xlu0 %290
    %292 = vrot.lane.b32.xlu0 %v112, 120
    %v293 = vpop.permute.xlu0 %292
    %294 = vrot.lane.b32.xlu0 %v113, 120
    %v295 = vpop.permute.xlu0 %294
    %296 = vrot.lane.b32.xlu0 %v114, 120
    %v297 = vpop.permute.xlu0 %296
    %v298 = vsel %vm171, %v291, 0.0
    %v299 = vsel %vm171, %v293, 0.0
    %v300 = vsel %vm171, %v295, 0.0
    %v301 = vsel %vm171, %v297, 0.0
    %v302 = vld [vmem:[#allocation5 + $0x5] sm:$0x1]
    %v303 = vlaneseq
    %v304 = vshrl.u32 %v303, 7
    %v305 = vsub.s32 0, %v304
    %v306 = vrot.slane %v302, %v305
    %v307 = vmul.f32 %v298, %v306
    %v308 = vmul.f32 %v299, %v306
    %v309 = vmul.f32 %v300, %v306
    %v310 = vmul.f32 %v301, %v306
    %v311 = vadd.f32 %v286, %v307
    %v312 = vadd.f32 %v287, %v308
    %v313 = vadd.f32 %v288, %v309
    %v314 = vadd.f32 %v289, %v310
    %v315 = vrot.slane %v111, 1
    %v316 = vrot.slane %v112, 1
    %v317 = vrot.slane %v113, 1
    %v318 = vrot.slane %v114, 1
    %vm319 = vcmp.lt.s32.totalorder %v116, 7
    %v320 = vsel %vm319, %v317, %v318
    %v321 = vsel %vm319, %v316, %v317
    %v322 = vsel %vm319, %v315, %v316
    %v323 = vsel %vm319, %v318, %v315
    %v324 = vsel %vm176, %v322, 0.0
    %v325 = vsel %vm177, %v321, 0.0
    %v326 = vsel %vm178, %v320, 0.0
    %v327 = vsel %vm179, %v323, 0.0
    %328 = vrot.lane.b32.xlu0 %v324, 8
    %v329 = vpop.permute.xlu0 %328
    %330 = vrot.lane.b32.xlu0 %v325, 8
    %v331 = vpop.permute.xlu0 %330
    %332 = vrot.lane.b32.xlu0 %v326, 8
    %v333 = vpop.permute.xlu0 %332
    %334 = vrot.lane.b32.xlu0 %v327, 8
    %v335 = vpop.permute.xlu0 %334
    %v336 = vsel %vm170, %v329, 0.0
    %v337 = vsel %vm170, %v331, 0.0
    %v338 = vsel %vm170, %v333, 0.0
    %v339 = vsel %vm170, %v335, 0.0
    %v340 = vld [vmem:[#allocation5 + $0x6] sm:$0x1]
    %v341 = vlaneseq
    %v342 = vshrl.u32 %v341, 7
    %v343 = vsub.s32 0, %v342
    %v344 = vrot.slane %v340, %v343
    %v345 = vmul.f32 %v336, %v344
    %v346 = vmul.f32 %v337, %v344
    %v347 = vmul.f32 %v338, %v344
    %v348 = vmul.f32 %v339, %v344
    %v349 = vadd.f32 %v311, %v345
    %v350 = vadd.f32 %v312, %v346
    %v351 = vadd.f32 %v313, %v347
    %v352 = vadd.f32 %v314, %v348
    %v353 = vld [vmem:[#allocation5 + $0x7] sm:$0x1]
    %v354 = vlaneseq
    %v355 = vshrl.u32 %v354, 7
    %v356 = vsub.s32 0, %v355
    %v357 = vrot.slane %v353, %v356
    %v358 = vmul.f32 %v324, %v357
    %v359 = vmul.f32 %v325, %v357
    %v360 = vmul.f32 %v326, %v357
    %v361 = vmul.f32 %v327, %v357
    %v362 = vadd.f32 %v349, %v358
    %v363 = vadd.f32 %v350, %v359
    %v364 = vadd.f32 %v351, %v360
    %v365 = vadd.f32 %v352, %v361
    %366 = vrot.lane.b32.xlu0 %v324, 120
    %v367 = vpop.permute.xlu0 %366
    %368 = vrot.lane.b32.xlu0 %v325, 120
    %v369 = vpop.permute.xlu0 %368
    %370 = vrot.lane.b32.xlu0 %v326, 120
    %v371 = vpop.permute.xlu0 %370
    %372 = vrot.lane.b32.xlu0 %v327, 120
    %v373 = vpop.permute.xlu0 %372
    %v374 = vsel %vm171, %v367, 0.0
    %v375 = vsel %vm171, %v369, 0.0
    %v376 = vsel %vm171, %v371, 0.0
    %v377 = vsel %vm171, %v373, 0.0
    %v378 = vld [vmem:[#allocation5 + $0x8] sm:$0x1]
    %v379 = vlaneseq
    %v380 = vshrl.u32 %v379, 7
    %v381 = vsub.s32 0, %v380
    %v382 = vrot.slane %v378, %v381
    %v383 = vmul.f32 %v374, %v382
    %v384 = vmul.f32 %v375, %v382
    %v385 = vmul.f32 %v376, %v382
    %v386 = vmul.f32 %v377, %v382
    %v387 = vadd.f32 %v362, %v383
    %v388 = vadd.f32 %v363, %v384
    %v389 = vadd.f32 %v364, %v385
    %v390 = vadd.f32 %v365, %v386
    %v391 = vld [vmem:[#allocation7] sm:$0x1]
    %v393 = vlaneseq
    %v394 = vshrl.u32 %v393, 7
    %v395 = vsub.s32 0, %v394
    %v396 = vrot.slane %v391, %v395
    %v398 = vadd.f32 %v387, %v396
    %v399 = vadd.f32 %v388, %v396
    %v400 = vadd.f32 %v389, %v396
    %v401 = vadd.f32 %v390, %v396
    %v402 = vmul.f32 %v398, 0.1
    %v403 = vmul.f32 %v399, 0.1
    %v404 = vmul.f32 %v400, 0.1
    %v405 = vmul.f32 %v401, 0.1
    %v406 = vmax.f32 %v398, %v402
    %v407 = vmax.f32 %v399, %v403
    %v408 = vmax.f32 %v400, %v404
    %v409 = vmax.f32 %v401, %v405
    %v410 = vld [vmem:[#allocation8] sm:$0xff]
    %v411 = vld [vmem:[#allocation8 + $0x8] sm:$0xff]
    %v412 = vld [vmem:[#allocation8 + $0x10] sm:$0xff]
    %v413 = vld [vmem:[#allocation8 + $0x18] sm:$0xff]
    %v414 = vld [vmem:[#allocation8 + $0x20] sm:$0xff]
    %v415 = vld [vmem:[#allocation8 + $0x28] sm:$0xff]
    %v416 = vld [vmem:[#allocation8 + $0x30] sm:$0xff]
    %v417 = vld [vmem:[#allocation8 + $0x38] sm:$0xff]
    %v418 = vld [vmem:[#allocation8 + $0x40] sm:$0xff]
    %v419 = vld [vmem:[#allocation8 + $0x48] sm:$0xff]
    %v420 = vld [vmem:[#allocation8 + $0x50] sm:$0xff]
    %v421 = vld [vmem:[#allocation8 + $0x58] sm:$0xff]
    %v422 = vld [vmem:[#allocation8 + $0x60] sm:$0xff]
    %v423 = vld [vmem:[#allocation8 + $0x68] sm:$0xff]
    %v424 = vld [vmem:[#allocation8 + $0x70] sm:$0xff]
    %v425 = vld [vmem:[#allocation8 + $0x78] sm:$0xff]
    %v426 = vld [vmem:[#allocation10] sm:$0x1]
    %v428 = vlaneseq
    %v429 = vshrl.u32 %v428, 7
    %v430 = vsub.s32 0, %v429
    %v431 = vrot.slane %v426, %v430
    %433 = vmatprep.subr.mxu0 0.0
    %434 = vmatpush1.msra.mxu0 %v410
    %435 = vmatprep.subr.mxu0 0.0
    %436 = vmatpush1.msra.mxu0 %v411
    %437 = vmatprep.subr.mxu0 0.0
    %438 = vmatpush1.msra.mxu0 %v412
    %439 = vmatprep.subr.mxu0 0.0
    %440 = vmatpush1.msra.mxu0 %v413
    %441 = vmatprep.subr.mxu0 0.0
    %442 = vmatpush1.msra.mxu0 %v414
    %443 = vmatprep.subr.mxu0 0.0
    %444 = vmatpush1.msra.mxu0 %v415
    %445 = vmatprep.subr.mxu0 0.0
    %446 = vmatpush1.msra.mxu0 %v416
    %447 = vmatprep.subr.mxu0 0.0
    %448 = vmatpush1.msra.mxu0 %v417
    %449 = vmatprep.subr.mxu0 0.0
    %450 = vmatpush1.msra.mxu0 %v418
    %451 = vmatprep.subr.mxu0 0.0
    %452 = vmatpush1.msra.mxu0 %v419
    %453 = vmatprep.subr.mxu0 0.0
    %454 = vmatpush1.msra.mxu0 %v420
    %455 = vmatprep.subr.mxu0 0.0
    %456 = vmatpush1.msra.mxu0 %v421
    %457 = vmatprep.subr.mxu0 0.0
    %458 = vmatpush1.msra.mxu0 %v422
    %459 = vmatprep.subr.mxu0 0.0
    %460 = vmatpush1.msra.mxu0 %v423
    %461 = vmatprep.subr.mxu0 0.0
    %462 = vmatpush1.msra.mxu0 %v424
    %463 = vmatprep.subr.mxu0 0.0
    %464 = vmatpush1.msra.mxu0 %v425
    %465 = vmatprep.subr.mxu0 0.0
    %466 = vmatpush1.msra.mxu0 0.0
    %467 = vmatprep.subr.mxu0 0.0
    %468 = vmatpush1.msra.mxu0 0.0
    %469 = vmatprep.subr.mxu0 0.0
    %470 = vmatpush1.msra.mxu0 0.0
    %471 = vmatprep.subr.mxu0 0.0
    %472 = vmatpush1.msra.mxu0 0.0
    %473 = vmatprep.subr.mxu0 0.0
    %474 = vmatpush1.msra.mxu0 0.0
    %475 = vmatprep.subr.mxu0 0.0
    %476 = vmatpush1.msra.mxu0 0.0
    %477 = vmatprep.subr.mxu0 0.0
    %478 = vmatpush1.msra.mxu0 0.0
    %479 = vmatprep.subr.mxu0 0.0
    %480 = vmatpush1.msra.mxu0 0.0
    %481 = vmatprep.subr.mxu0 0.0
    %482 = vmatpush1.msra.mxu0 0.0
    %483 = vmatprep.subr.mxu0 0.0
    %484 = vmatpush1.msra.mxu0 0.0
    %485 = vmatprep.subr.mxu0 0.0
    %486 = vmatpush1.msra.mxu0 0.0
    %487 = vmatprep.subr.mxu0 0.0
    %488 = vmatpush1.msra.mxu0 0.0
    %489 = vmatprep.subr.mxu0 0.0
    %490 = vmatpush1.msra.mxu0 0.0
    %491 = vmatprep.subr.mxu0 0.0
    %492 = vmatpush1.msra.mxu0 0.0
    %493 = vmatprep.subr.mxu0 0.0
    %494 = vmatpush1.msra.mxu0 0.0
    %495 = vmatprep.subr.mxu0 0.0
    %496 = vmatpush1.msra.mxu0 0.0
    %497 = vmatprep.mubr.f32.mxu0 0.0
    %498 = vmatmul.mubr.f32.gmra.mrb[0].mxu0 %v406
    %v499 = vpop.f32.mrb[0].mxu0
    %v500 = vadd.f32 %v431, %v499
    %v501 = vpop.f32.mrb[0].mxu0
    %502 = vmatprep.mubr.f32.mxu0 0.0
    %503 = vmatmul.mubr.f32.gmra.mrb[0].mxu0 %v407
    %v504 = vpop.f32.mrb[0].mxu0
    %v505 = vadd.f32 %v431, %v504
    %v506 = vpop.f32.mrb[0].mxu0
    %507 = vmatprep.mubr.f32.mxu0 0.0
    %508 = vmatmul.mubr.f32.gmra.mrb[0].mxu0 %v408
    %v509 = vpop.f32.mrb[0].mxu0
    %v510 = vadd.f32 %v431, %v509
    %v511 = vpop.f32.mrb[0].mxu0
    %512 = vmatprep.mubr.f32.mxu0 0.0
    %513 = vmatmul.mubr.f32.gmra.mrb[0].mxu0 %v409
    %v514 = vpop.f32.mrb[0].mxu0
    %v515 = vadd.f32 %v431, %v514
    %v516 = vpop.f32.mrb[0].mxu0
    %517 = vdwg.mxu0
    %v518 = vmul.f32 %v500, 0.1
    %v519 = vmul.f32 %v505, 0.1
    %v520 = vmul.f32 %v510, 0.1
    %v521 = vmul.f32 %v515, 0.1
    %v522 = vmax.f32 %v500, %v518
    %v523 = vmax.f32 %v505, %v519
    %v524 = vmax.f32 %v510, %v520
    %v525 = vmax.f32 %v515, %v521
    %v526 = vadd.f32 %v522, %v111
    %v527 = vadd.f32 %v523, %v112
    %v528 = vadd.f32 %v524, %v113
    %v529 = vadd.f32 %v525, %v114
    %v530 = vrot.slane %v526, 7
    %v531 = vrot.slane %v527, 7
    %v532 = vrot.slane %v528, 7
    %v533 = vrot.slane %v529, 7
    %v534 = vsel %vm184, %v532, %v533
    %v535 = vsel %vm184, %v531, %v532
    %v536 = vsel %vm184, %v530, %v531
    %v537 = vsel %vm184, %v533, %v530
    %v538 = vsel %vm172, %v537, 0.0
    %v539 = vsel %vm173, %v536, 0.0
    %v540 = vsel %vm174, %v535, 0.0
    %v541 = vsel %vm175, %v534, 0.0
    %542 = vrot.lane.b32.xlu0 %v538, 8
    %v543 = vpop.permute.xlu0 %542
    %544 = vrot.lane.b32.xlu0 %v539, 8
    %v545 = vpop.permute.xlu0 %544
    %546 = vrot.lane.b32.xlu0 %v540, 8
    %v547 = vpop.permute.xlu0 %546
    %548 = vrot.lane.b32.xlu0 %v541, 8
    %v549 = vpop.permute.xlu0 %548
    %v550 = vsel %vm170, %v543, 0.0
    %v551 = vsel %vm170, %v545, 0.0
    %v552 = vsel %vm170, %v547, 0.0
    %v553 = vsel %vm170, %v549, 0.0
    %v554 = vld [vmem:[%s5] sm:$0x1]
    %v555 = vlaneseq
    %v556 = vshrl.u32 %v555, 7
    %v557 = vsub.s32 0, %v556
    %v558 = vrot.slane %v554, %v557
    %v559 = vmul.f32 %v550, %v558
    %v560 = vmul.f32 %v551, %v558
    %v561 = vmul.f32 %v552, %v558
    %v562 = vmul.f32 %v553, %v558
    %v563 = vld [vmem:[%s5 + $0x1] sm:$0x1]
    %v564 = vlaneseq
    %v565 = vshrl.u32 %v564, 7
    %v566 = vsub.s32 0, %v565
    %v567 = vrot.slane %v563, %v566
    %v568 = vmul.f32 %v538, %v567
    %v569 = vmul.f32 %v539, %v567
    %v570 = vmul.f32 %v540, %v567
    %v571 = vmul.f32 %v541, %v567
    %v572 = vadd.f32 %v559, %v568
    %v573 = vadd.f32 %v560, %v569
    %v574 = vadd.f32 %v561, %v570
    %v575 = vadd.f32 %v562, %v571
    %576 = vrot.lane.b32.xlu0 %v538, 120
    %v577 = vpop.permute.xlu0 %576
    %578 = vrot.lane.b32.xlu0 %v539, 120
    %v579 = vpop.permute.xlu0 %578
    %580 = vrot.lane.b32.xlu0 %v540, 120
    %v581 = vpop.permute.xlu0 %580
    %582 = vrot.lane.b32.xlu0 %v541, 120
    %v583 = vpop.permute.xlu0 %582
    %v584 = vsel %vm171, %v577, 0.0
    %v585 = vsel %vm171, %v579, 0.0
    %v586 = vsel %vm171, %v581, 0.0
    %v587 = vsel %vm171, %v583, 0.0
    %v588 = vld [vmem:[%s5 + $0x2] sm:$0x1]
    %v589 = vlaneseq
    %v590 = vshrl.u32 %v589, 7
    %v591 = vsub.s32 0, %v590
    %v592 = vrot.slane %v588, %v591
    %v593 = vmul.f32 %v584, %v592
    %v594 = vmul.f32 %v585, %v592
    %v595 = vmul.f32 %v586, %v592
    %v596 = vmul.f32 %v587, %v592
    %v597 = vadd.f32 %v572, %v593
    %v598 = vadd.f32 %v573, %v594
    %v599 = vadd.f32 %v574, %v595
    %v600 = vadd.f32 %v575, %v596
    %601 = vrot.lane.b32.xlu0 %v526, 8
    %v602 = vpop.permute.xlu0 %601
    %603 = vrot.lane.b32.xlu0 %v527, 8
    %v604 = vpop.permute.xlu0 %603
    %605 = vrot.lane.b32.xlu0 %v528, 8
    %v606 = vpop.permute.xlu0 %605
    %607 = vrot.lane.b32.xlu0 %v529, 8
    %v608 = vpop.permute.xlu0 %607
    %v609 = vsel %vm170, %v602, 0.0
    %v610 = vsel %vm170, %v604, 0.0
    %v611 = vsel %vm170, %v606, 0.0
    %v612 = vsel %vm170, %v608, 0.0
    %v613 = vld [vmem:[%s5 + $0x3] sm:$0x1]
    %v614 = vlaneseq
    %v615 = vshrl.u32 %v614, 7
    %v616 = vsub.s32 0, %v615
    %v617 = vrot.slane %v613, %v616
    %v618 = vmul.f32 %v609, %v617
    %v619 = vmul.f32 %v610, %v617
    %v620 = vmul.f32 %v611, %v617
    %v621 = vmul.f32 %v612, %v617
    %v622 = vadd.f32 %v597, %v618
    %v623 = vadd.f32 %v598, %v619
    %v624 = vadd.f32 %v599, %v620
    %v625 = vadd.f32 %v600, %v621
    %v626 = vld [vmem:[%s5 + $0x4] sm:$0x1]
    %v627 = vlaneseq
    %v628 = vshrl.u32 %v627, 7
    %v629 = vsub.s32 0, %v628
    %v630 = vrot.slane %v626, %v629
    %v631 = vmul.f32 %v526, %v630
    %v632 = vmul.f32 %v527, %v630
    %v633 = vmul.f32 %v528, %v630
    %v634 = vmul.f32 %v529, %v630
    %v635 = vadd.f32 %v622, %v631
    %v636 = vadd.f32 %v623, %v632
    %v637 = vadd.f32 %v624, %v633
    %v638 = vadd.f32 %v625, %v634
    %639 = vrot.lane.b32.xlu0 %v526, 120
    %v640 = vpop.permute.xlu0 %639
    %641 = vrot.lane.b32.xlu0 %v527, 120
    %v642 = vpop.permute.xlu0 %641
    %643 = vrot.lane.b32.xlu0 %v528, 120
    %v644 = vpop.permute.xlu0 %643
    %645 = vrot.lane.b32.xlu0 %v529, 120
    %v646 = vpop.permute.xlu0 %645
    %v647 = vsel %vm171, %v640, 0.0
    %v648 = vsel %vm171, %v642, 0.0
    %v649 = vsel %vm171, %v644, 0.0
    %v650 = vsel %vm171, %v646, 0.0
    %v651 = vld [vmem:[%s5 + $0x5] sm:$0x1]
    %v652 = vlaneseq
    %v653 = vshrl.u32 %v652, 7
    %v654 = vsub.s32 0, %v653
    %v655 = vrot.slane %v651, %v654
    %v656 = vmul.f32 %v647, %v655
    %v657 = vmul.f32 %v648, %v655
    %v658 = vmul.f32 %v649, %v655
    %v659 = vmul.f32 %v650, %v655
    %v660 = vadd.f32 %v635, %v656
    %v661 = vadd.f32 %v636, %v657
    %v662 = vadd.f32 %v637, %v658
    %v663 = vadd.f32 %v638, %v659
    %v664 = vrot.slane %v526, 1
    %v665 = vrot.slane %v527, 1
    %v666 = vrot.slane %v528, 1
    %v667 = vrot.slane %v529, 1
    %v668 = vsel %vm319, %v666, %v667
    %v669 = vsel %vm319, %v665, %v666
    %v670 = vsel %vm319, %v664, %v665
    %v671 = vsel %vm319, %v667, %v664
    %v672 = vsel %vm176, %v670, 0.0
    %v673 = vsel %vm177, %v669, 0.0
    %v674 = vsel %vm178, %v668, 0.0
    %v675 = vsel %vm179, %v671, 0.0
    %676 = vrot.lane.b32.xlu0 %v672, 8
    %v677 = vpop.permute.xlu0 %676
    %678 = vrot.lane.b32.xlu0 %v673, 8
    %v679 = vpop.permute.xlu0 %678
    %680 = vrot.lane.b32.xlu0 %v674, 8
    %v681 = vpop.permute.xlu0 %680
    %682 = vrot.lane.b32.xlu0 %v675, 8
    %v683 = vpop.permute.xlu0 %682
    %v684 = vsel %vm170, %v677, 0.0
    %v685 = vsel %vm170, %v679, 0.0
    %v686 = vsel %vm170, %v681, 0.0
    %v687 = vsel %vm170, %v683, 0.0
    %v688 = vld [vmem:[%s5 + $0x6] sm:$0x1]
    %v689 = vlaneseq
    %v690 = vshrl.u32 %v689, 7
    %v691 = vsub.s32 0, %v690
    %v692 = vrot.slane %v688, %v691
    %v693 = vmul.f32 %v684, %v692
    %v694 = vmul.f32 %v685, %v692
    %v695 = vmul.f32 %v686, %v692
    %v696 = vmul.f32 %v687, %v692
    %v697 = vadd.f32 %v660, %v693
    %v698 = vadd.f32 %v661, %v694
    %v699 = vadd.f32 %v662, %v695
    %v700 = vadd.f32 %v663, %v696
    %v701 = vld [vmem:[%s5 + $0x7] sm:$0x1]
    %v702 = vlaneseq
    %v703 = vshrl.u32 %v702, 7
    %v704 = vsub.s32 0, %v703
    %v705 = vrot.slane %v701, %v704
    %v706 = vmul.f32 %v672, %v705
    %v707 = vmul.f32 %v673, %v705
    %v708 = vmul.f32 %v674, %v705
    %v709 = vmul.f32 %v675, %v705
    %v710 = vadd.f32 %v697, %v706
    %v711 = vadd.f32 %v698, %v707
    %v712 = vadd.f32 %v699, %v708
    %v713 = vadd.f32 %v700, %v709
    %714 = vrot.lane.b32.xlu0 %v672, 120
    %v715 = vpop.permute.xlu0 %714
    %716 = vrot.lane.b32.xlu0 %v673, 120
    %v717 = vpop.permute.xlu0 %716
    %718 = vrot.lane.b32.xlu0 %v674, 120
    %v719 = vpop.permute.xlu0 %718
    %720 = vrot.lane.b32.xlu0 %v675, 120
    %v721 = vpop.permute.xlu0 %720
    %v722 = vsel %vm171, %v715, 0.0
    %v723 = vsel %vm171, %v717, 0.0
    %v724 = vsel %vm171, %v719, 0.0
    %v725 = vsel %vm171, %v721, 0.0
    %v726 = vld [vmem:[%s5 + $0x8] sm:$0x1]
    %v727 = vlaneseq
    %v728 = vshrl.u32 %v727, 7
    %v729 = vsub.s32 0, %v728
    %v730 = vrot.slane %v726, %v729
    %v731 = vmul.f32 %v722, %v730
    %v732 = vmul.f32 %v723, %v730
    %v733 = vmul.f32 %v724, %v730
    %v734 = vmul.f32 %v725, %v730
    %v735 = vadd.f32 %v710, %v731
    %v736 = vadd.f32 %v711, %v732
    %v737 = vadd.f32 %v712, %v733
    %v738 = vadd.f32 %v713, %v734
    %v739 = vld [vmem:[%s6] sm:$0x1]
    %v741 = vlaneseq
    %v742 = vshrl.u32 %v741, 7
    %v743 = vsub.s32 0, %v742
    %v744 = vrot.slane %v739, %v743
    %v746 = vadd.f32 %v735, %v744
    %v747 = vadd.f32 %v736, %v744
    %v748 = vadd.f32 %v737, %v744
    %v749 = vadd.f32 %v738, %v744
    %v750 = vmul.f32 %v746, 0.1
    %v751 = vmul.f32 %v747, 0.1
    %v752 = vmul.f32 %v748, 0.1
    %v753 = vmul.f32 %v749, 0.1
    %v754 = vmax.f32 %v746, %v750
    %v755 = vmax.f32 %v747, %v751
    %v756 = vmax.f32 %v748, %v752
    %v757 = vmax.f32 %v749, %v753
    %v758 = vld [vmem:[#allocation11] sm:$0xff]
    %v759 = vld [vmem:[#allocation11 + $0x8] sm:$0xff]
    %v760 = vld [vmem:[#allocation11 + $0x10] sm:$0xff]
    %v761 = vld [vmem:[#allocation11 + $0x18] sm:$0xff]
    %v762 = vld [vmem:[#allocation11 + $0x20] sm:$0xff]
    %v763 = vld [vmem:[#allocation11 + $0x28] sm:$0xff]
    %v764 = vld [vmem:[#allocation11 + $0x30] sm:$0xff]
    %v765 = vld [vmem:[#allocation11 + $0x38] sm:$0xff]
    %v766 = vld [vmem:[#allocation11 + $0x40] sm:$0xff]
    %v767 = vld [vmem:[#allocation11 + $0x48] sm:$0xff]
    %v768 = vld [vmem:[#allocation11 + $0x50] sm:$0xff]
    %v769 = vld [vmem:[#allocation11 + $0x58] sm:$0xff]
    %v770 = vld [vmem:[#allocation11 + $0x60] sm:$0xff]
    %v771 = vld [vmem:[#allocation11 + $0x68] sm:$0xff]
    %v772 = vld [vmem:[#allocation11 + $0x70] sm:$0xff]
    %v773 = vld [vmem:[#allocation11 + $0x78] sm:$0xff]
    %v774 = vld [vmem:[#allocation11 + $0x80] sm:$0xff]
    %v775 = vld [vmem:[#allocation11 + $0x88] sm:$0xff]
    %v776 = vld [vmem:[#allocation11 + $0x90] sm:$0xff]
    %v777 = vld [vmem:[#allocation11 + $0x98] sm:$0xff]
    %v778 = vld [vmem:[#allocation11 + $0xa0] sm:$0xff]
    %v779 = vld [vmem:[#allocation11 + $0xa8] sm:$0xff]
    %v780 = vld [vmem:[#allocation11 + $0xb0] sm:$0xff]
    %v781 = vld [vmem:[#allocation11 + $0xb8] sm:$0xff]
    %v782 = vld [vmem:[#allocation11 + $0xc0] sm:$0xff]
    %v783 = vld [vmem:[#allocation11 + $0xc8] sm:$0xff]
    %v784 = vld [vmem:[#allocation11 + $0xd0] sm:$0xff]
    %v785 = vld [vmem:[#allocation11 + $0xd8] sm:$0xff]
    %v786 = vld [vmem:[#allocation11 + $0xe0] sm:$0xff]
    %v787 = vld [vmem:[#allocation11 + $0xe8] sm:$0xff]
    %v788 = vld [vmem:[#allocation11 + $0xf0] sm:$0xff]
    %v789 = vld [vmem:[#allocation11 + $0xf8] sm:$0xff]
    %v790 = vld [vmem:[%s8] sm:$0x3]
    %v792 = vlaneseq
    %v793 = vshrl.u32 %v792, 7
    %v794 = vsub.s32 0, %v793
    %v795 = vrot.slane %v790, %v794
    %v796 = vlaneseq
    %v797 = vshrl.u32 %v796, 7
    %v798 = vsub.s32 1, %v797
    %v799 = vrot.slane %v790, %v798
    %802 = vmatprep.subr.mxu0 %v759
    %803 = vmatpush1.msra.mxu0 %v758
    %804 = vmatprep.subr.mxu0 %v761
    %805 = vmatpush1.msra.mxu0 %v760
    %806 = vmatprep.subr.mxu0 %v763
    %807 = vmatpush1.msra.mxu0 %v762
    %808 = vmatprep.subr.mxu0 %v765
    %809 = vmatpush1.msra.mxu0 %v764
    %810 = vmatprep.subr.mxu0 %v767
    %811 = vmatpush1.msra.mxu0 %v766
    %812 = vmatprep.subr.mxu0 %v769
    %813 = vmatpush1.msra.mxu0 %v768
    %814 = vmatprep.subr.mxu0 %v771
    %815 = vmatpush1.msra.mxu0 %v770
    %816 = vmatprep.subr.mxu0 %v773
    %817 = vmatpush1.msra.mxu0 %v772
    %818 = vmatprep.subr.mxu0 %v775
    %819 = vmatpush1.msra.mxu0 %v774
    %820 = vmatprep.subr.mxu0 %v777
    %821 = vmatpush1.msra.mxu0 %v776
    %822 = vmatprep.subr.mxu0 %v779
    %823 = vmatpush1.msra.mxu0 %v778
    %824 = vmatprep.subr.mxu0 %v781
    %825 = vmatpush1.msra.mxu0 %v780
    %826 = vmatprep.subr.mxu0 %v783
    %827 = vmatpush1.msra.mxu0 %v782
    %828 = vmatprep.subr.mxu0 %v785
    %829 = vmatpush1.msra.mxu0 %v784
    %830 = vmatprep.subr.mxu0 %v787
    %831 = vmatpush1.msra.mxu0 %v786
    %832 = vmatprep.subr.mxu0 %v789
    %833 = vmatpush1.msra.mxu0 %v788
    %834 = vmatprep.subr.mxu0 0.0
    %835 = vmatpush1.msra.mxu0 0.0
    %836 = vmatprep.subr.mxu0 0.0
    %837 = vmatpush1.msra.mxu0 0.0
    %838 = vmatprep.subr.mxu0 0.0
    %839 = vmatpush1.msra.mxu0 0.0
    %840 = vmatprep.subr.mxu0 0.0
    %841 = vmatpush1.msra.mxu0 0.0
    %842 = vmatprep.subr.mxu0 0.0
    %843 = vmatpush1.msra.mxu0 0.0
    %844 = vmatprep.subr.mxu0 0.0
    %845 = vmatpush1.msra.mxu0 0.0
    %846 = vmatprep.subr.mxu0 0.0
    %847 = vmatpush1.msra.mxu0 0.0
    %848 = vmatprep.subr.mxu0 0.0
    %849 = vmatpush1.msra.mxu0 0.0
    %850 = vmatprep.subr.mxu0 0.0
    %851 = vmatpush1.msra.mxu0 0.0
    %852 = vmatprep.subr.mxu0 0.0
    %853 = vmatpush1.msra.mxu0 0.0
    %854 = vmatprep.subr.mxu0 0.0
    %855 = vmatpush1.msra.mxu0 0.0
    %856 = vmatprep.subr.mxu0 0.0
    %857 = vmatpush1.msra.mxu0 0.0
    %858 = vmatprep.subr.mxu0 0.0
    %859 = vmatpush1.msra.mxu0 0.0
    %860 = vmatprep.subr.mxu0 0.0
    %861 = vmatpush1.msra.mxu0 0.0
    %862 = vmatprep.subr.mxu0 0.0
    %863 = vmatpush1.msra.mxu0 0.0
    %864 = vmatprep.subr.mxu0 0.0
    %865 = vmatpush1.msra.mxu0 0.0
    %866 = vmatprep.mubr.f32.mxu0 0.0
    %867 = vmatmul.mubr.f32.gmra.mrb[0].mxu0 %v754
    %v868 = vpop.f32.mrb[0].mxu0
    %v869 = vadd.f32 %v795, %v868
    %v870 = vpop.f32.mrb[0].mxu0
    %v871 = vadd.f32 %v799, %v870
    %872 = vmatprep.mubr.f32.mxu0 0.0
    %873 = vmatmul.mubr.f32.gmra.mrb[0].mxu0 %v755
    %v874 = vpop.f32.mrb[0].mxu0
    %v875 = vadd.f32 %v795, %v874
    %v876 = vpop.f32.mrb[0].mxu0
    %v877 = vadd.f32 %v799, %v876
    %878 = vmatprep.mubr.f32.mxu0 0.0
    %879 = vmatmul.mubr.f32.gmra.mrb[0].mxu0 %v756
    %v880 = vpop.f32.mrb[0].mxu0
    %v881 = vadd.f32 %v795, %v880
    %v882 = vpop.f32.mrb[0].mxu0
    %v883 = vadd.f32 %v799, %v882
    %884 = vmatprep.mubr.f32.mxu0 0.0
    %885 = vmatmul.mubr.f32.gmra.mrb[0].mxu0 %v757
    %v886 = vpop.f32.mrb[0].mxu0
    %v887 = vadd.f32 %v795, %v886
    %v888 = vpop.f32.mrb[0].mxu0
    %v889 = vadd.f32 %v799, %v888
    %890 = vdwg.mxu0
    %v891 = vmul.f32 %v869, 0.1
    %v892 = vmul.f32 %v871, 0.1
    %v893 = vmul.f32 %v875, 0.1
    %v894 = vmul.f32 %v877, 0.1
    %v895 = vmul.f32 %v881, 0.1
    %v896 = vmul.f32 %v883, 0.1
    %v897 = vmul.f32 %v887, 0.1
    %v898 = vmul.f32 %v889, 0.1
    %v899 = vmax.f32 %v869, %v891
    %v900 = vmax.f32 %v871, %v892
    %v901 = vmax.f32 %v875, %v893
    %v902 = vmax.f32 %v877, %v894
    %v903 = vmax.f32 %v881, %v895
    %v904 = vmax.f32 %v883, %v896
    %v905 = vmax.f32 %v887, %v897
    %v906 = vmax.f32 %v889, %v898
    %907 = vst [vmem:[#allocation13] sm:$0xff] %v899
    %908 = vst [vmem:[#allocation13 + $0x8] sm:$0xff] %v900
    %909 = vst [vmem:[#allocation13 + $0x10] sm:$0xff] %v901
    %910 = vst [vmem:[#allocation13 + $0x18] sm:$0xff] %v902
    %911 = vst [vmem:[#allocation13 + $0x20] sm:$0xff] %v903
    %912 = vst [vmem:[#allocation13 + $0x28] sm:$0xff] %v904
    %913 = vst [vmem:[#allocation13 + $0x30] sm:$0xff] %v905
    %914 = vst [vmem:[#allocation13 + $0x38] sm:$0xff] %v906
    // Predicated region
    $region62: #{tpu_custom_call.1} parent=1 // pred_check
      _
    $region63: #{tpu_custom_call.1} parent=1 // pred_check_branch
      %916 = sbr.rel (0) target = $region65
    $region64: #{tpu_custom_call.1} parent=1 // pred_region
      %s918 = ssub.s32 1024, 1024
      %919 = vsyncadd [#allocation4], %s918
      %s920 = sshll.u32 [#allocation13], 4
      %s921 = int_to_ptr.vmem [resolvable:$true] %s920
      %926 = dma.vmem_to_hbm [thread:$0]  %s921, 1024, %s9, [#allocation4], 256, 256, 16
    $region65: #{tpu_custom_call.1} parent=1 // pred_fallthru
      _
    // Predicated region
    $region66: #{tpu_custom_call.1} parent=1 // pred_check
      _
    $region67: #{tpu_custom_call.1} parent=1 // pred_check_branch
      %928 = sbr.rel (0) target = $region69
    $region68: #{tpu_custom_call.1} parent=1 // pred_region
      %929 = dma.done [#allocation4], 1024
    $region69: #{tpu_custom_call.1} parent=1 // pred_fallthru
      _
    %930 = vsyncpa [#allocation3], 1
    %931 = vsyncpa [#allocation6], 1
    %932 = vsyncpa [#allocation9], 1
    %933 = vsyncpa [#allocation12], 1
    %934 = vsyncpa [#allocation4], 1

// kernel: tpu_custom_call.1
$region0: #{tpu_custom_call.1}
  #allocation0 [shape = 'u32[]', space=smem, size = 0x4, offset = 0x4, fixed_abs, tag = 'smem constant byte address 0x4 - core index']
  #allocation1 [shape = 'u32[144,128]{1,0:T(1,128)}', space=vmem, size = 0x12000, scoped, tag = 'internal scratch']
  %s0 = inlined_call_operand.hbm [shape: f32[32,128], index: 0, kind: input, shape index: {}]
  %s1 = inlined_call_operand.hbm [shape: f32[9,128], index: 1, kind: input, shape index: {}]
  %s2 = inlined_call_operand.hbm [shape: f32[1,128], index: 2, kind: input, shape index: {}]
  %s3 = inlined_call_operand.hbm [shape: f32[128,128], index: 3, kind: input, shape index: {}]
  %s4 = inlined_call_operand.hbm [shape: f32[1,128], index: 4, kind: input, shape index: {}]
  %s5 = inlined_call_operand.vmem [shape: f32[9,128], index: 5, kind: input, shape index: {}]
  %s6 = inlined_call_operand.vmem [shape: f32[1,128], index: 6, kind: input, shape index: {}]
  %s7 = inlined_call_operand.hbm [shape: f32[128,256], index: 7, kind: input, shape index: {}]
  %s8 = inlined_call_operand.vmem [shape: f32[1,256], index: 8, kind: input, shape index: {}]
  %s9 = inlined_call_operand.hbm [shape: f32[32,256], index: 9, kind: output, shape index: {}]
  %s10 = sld [smem:[#allocation0]]
  $region70: #{tpu_custom_call.1} parent=0
    _
  %s12 = ssub.s32 1, %s10
  %s13 = scalar_select 0, %s12, %s10
  $region1: #{tpu_custom_call.1} parent=0
    #allocation2 [shape = 'u8[16384]{0}', space=vmem, size = 0x4000, scoped, tag = 'input window, operand 0, single buffered']
    #allocation3 [shape = 's32[1]{0}', space=sflag, size = 0x4, scoped, tag = 'scoped memory for tpu_custom_call.1']
    #allocation4 [shape = 's32[1]{0}', space=sflag, size = 0x4, scoped, tag = 'scoped memory for tpu_custom_call.1']
    #allocation5 [shape = 'u8[8192]{0}', space=vmem, size = 0x2000, scoped, tag = 'input window, operand 1, single buffered']
    #allocation6 [shape = 's32[1]{0}', space=sflag, size = 0x4, scoped, tag = 'scoped memory for tpu_custom_call.1']
    #allocation7 [shape = 'u8[512]{0}', space=vmem, size = 0x400, scoped, tag = 'input window, operand 2, single buffered']
    #allocation8 [shape = 'u8[65536]{0}', space=vmem, size = 0x10000, scoped, tag = 'input window, operand 3, single buffered']
    #allocation9 [shape = 's32[1]{0}', space=sflag, size = 0x4, scoped, tag = 'scoped memory for tpu_custom_call.1']
    #allocation10 [shape = 'u8[512]{0}', space=vmem, size = 0x400, scoped, tag = 'input window, operand 4, single buffered']
    #allocation11 [shape = 'u8[131072]{0}', space=vmem, size = 0x20000, scoped, tag = 'input window, operand 7, single buffered']
    #allocation12 [shape = 's32[1]{0}', space=sflag, size = 0x4, scoped, tag = 'scoped memory for tpu_custom_call.1']
    #allocation13 [shape = 'u8[32768]{0}', space=vmem, size = 0x8000, scoped, tag = 'output window, operand 0, single buffered']
    %14 = vsyncpa [#allocation3], 0
    %15 = vsyncpa [#allocation6], 0
    %16 = vsyncpa [#allocation9], 0
    %17 = vsyncpa [#allocation12], 0
    %18 = vsyncpa [#allocation4], 0
    // Predicated region
    $region2: #{tpu_custom_call.1} parent=1 // pred_check
      _
    $region3: #{tpu_custom_call.1} parent=1 // pred_check_branch
      %20 = sbr.rel (0) target = $region5
    $region4: #{tpu_custom_call.1} parent=1 // pred_region
      %s22 = ssub.s32 512, 512
      %23 = vsyncadd [#allocation3], %s22
      %s24 = sshll.u32 [#allocation2], 4
      %s25 = int_to_ptr.vmem [resolvable:$true] %s24
      %30 = dma.hbm_to_vmem [thread:$0]  %s0, 512, %s25, [#allocation3], 128, 128, 8
    $region5: #{tpu_custom_call.1} parent=1 // pred_fallthru
      _
    // Predicated region
    $region6: #{tpu_custom_call.1} parent=1 // pred_check
      _
    $region7: #{tpu_custom_call.1} parent=1 // pred_check_branch
      %32 = sbr.rel (0) target = $region9
    $region8: #{tpu_custom_call.1} parent=1 // pred_region
      %s34 = ssub.s32 256, 256
      %35 = vsyncadd [#allocation6], %s34
      %s36 = sshll.u32 [#allocation5], 4
      %s37 = int_to_ptr.vmem [resolvable:$true] %s36
      %42 = dma.hbm_to_vmem [thread:$0]  %s1, 256, %s37, [#allocation6], 128, 128, 8
    $region9: #{tpu_custom_call.1} parent=1 // pred_fallthru
      _
    // Predicated region
    $region10: #{tpu_custom_call.1} parent=1 // pred_check
      _
    $region11: #{tpu_custom_call.1} parent=1 // pred_check_branch
      %44 = sbr.rel (0) target = $region13
    $region12: #{tpu_custom_call.1} parent=1 // pred_region
      %s46 = ssub.s32 16, 16
      %47 = vsyncadd [#allocation6], %s46
      %s49 = sshll.u32 [#allocation7], 4
      %s50 = int_to_ptr.vmem [resolvable:$true] %s49
      %52 = dma.hbm_to_vmem [thread:$0]  %s2, 16, %s50, [#allocation6]
    $region13: #{tpu_custom_call.1} parent=1 // pred_fallthru
      _
    // Predicated region
    $region14: #{tpu_custom_call.1} parent=1 // pred_check
      _
    $region15: #{tpu_custom_call.1} parent=1 // pred_check_branch
      %54 = sbr.rel (0) target = $region17
    $region16: #{tpu_custom_call.1} parent=1 // pred_region
      %s56 = ssub.s32 2048, 2048
      %57 = vsyncadd [#allocation9], %s56
      %s58 = sshll.u32 [#allocation8], 4
      %s59 = int_to_ptr.vmem [resolvable:$true] %s58
      %64 = dma.hbm_to_vmem [thread:$0]  %s3, 2048, %s59, [#allocation9], 128, 128, 8
    $region17: #{tpu_custom_call.1} parent=1 // pred_fallthru
      _
    // Predicated region
    $region18: #{tpu_custom_call.1} parent=1 // pred_check
      _
    $region19: #{tpu_custom_call.1} parent=1 // pred_check_branch
      %66 = sbr.rel (0) target = $region21
    $region20: #{tpu_custom_call.1} parent=1 // pred_region
      %s68 = ssub.s32 16, 16
      %69 = vsyncadd [#allocation9], %s68
      %s71 = sshll.u32 [#allocation10], 4
      %s72 = int_to_ptr.vmem [resolvable:$true] %s71
      %74 = dma.hbm_to_vmem [thread:$0]  %s4, 16, %s72, [#allocation9]
    $region21: #{tpu_custom_call.1} parent=1 // pred_fallthru
      _
    // Predicated region
    $region22: #{tpu_custom_call.1} parent=1 // pred_check
      _
    $region23: #{tpu_custom_call.1} parent=1 // pred_check_branch
      %76 = sbr.rel (0) target = $region25
    $region24: #{tpu_custom_call.1} parent=1 // pred_region
      _
    $region25: #{tpu_custom_call.1} parent=1 // pred_fallthru
      _
    // Predicated region
    $region26: #{tpu_custom_call.1} parent=1 // pred_check
      _
    $region27: #{tpu_custom_call.1} parent=1 // pred_check_branch
      %78 = sbr.rel (0) target = $region29
    $region28: #{tpu_custom_call.1} parent=1 // pred_region
      _
    $region29: #{tpu_custom_call.1} parent=1 // pred_fallthru
      _
    // Predicated region
    $region30: #{tpu_custom_call.1} parent=1 // pred_check
      _
    $region31: #{tpu_custom_call.1} parent=1 // pred_check_branch
      %80 = sbr.rel (0) target = $region33
    $region32: #{tpu_custom_call.1} parent=1 // pred_region
      %s82 = ssub.s32 4096, 4096
      %83 = vsyncadd [#allocation12], %s82
      %s84 = sshll.u32 [#allocation11], 4
      %s85 = int_to_ptr.vmem [resolvable:$true] %s84
      %90 = dma.hbm_to_vmem [thread:$0]  %s7, 4096, %s85, [#allocation12], 256, 256, 16
    $region33: #{tpu_custom_call.1} parent=1 // pred_fallthru
      _
    // Predicated region
    $region34: #{tpu_custom_call.1} parent=1 // pred_check
      _
    $region35: #{tpu_custom_call.1} parent=1 // pred_check_branch
      %92 = sbr.rel (0) target = $region37
    $region36: #{tpu_custom_call.1} parent=1 // pred_region
      _
    $region37: #{tpu_custom_call.1} parent=1 // pred_fallthru
      _
    // Predicated region
    $region38: #{tpu_custom_call.1} parent=1 // pred_check
      _
    $region39: #{tpu_custom_call.1} parent=1 // pred_check_branch
      %94 = sbr.rel (0) target = $region41
    $region40: #{tpu_custom_call.1} parent=1 // pred_region
      %95 = dma.done [#allocation3], 512
    $region41: #{tpu_custom_call.1} parent=1 // pred_fallthru
      _
    // Predicated region
    $region42: #{tpu_custom_call.1} parent=1 // pred_check
      _
    $region43: #{tpu_custom_call.1} parent=1 // pred_check_branch
      %97 = sbr.rel (0) target = $region45
    $region44: #{tpu_custom_call.1} parent=1 // pred_region
      %98 = dma.done [#allocation6], 256
    $region45: #{tpu_custom_call.1} parent=1 // pred_fallthru
      _
    // Predicated region
    $region46: #{tpu_custom_call.1} parent=1 // pred_check
      _
    $region47: #{tpu_custom_call.1} parent=1 // pred_check_branch
      %100 = sbr.rel (0) target = $region49
    $region48: #{tpu_custom_call.1} parent=1 // pred_region
      %101 = dma.done [#allocation6], 16
    $region49: #{tpu_custom_call.1} parent=1 // pred_fallthru
      _
    // Predicated region
    $region50: #{tpu_custom_call.1} parent=1 // pred_check
      _
    $region51: #{tpu_custom_call.1} parent=1 // pred_check_branch
      %103 = sbr.rel (0) target = $region53
    $region52: #{tpu_custom_call.1} parent=1 // pred_region
      %104 = dma.done [#allocation9], 2048
    $region53: #{tpu_custom_call.1} parent=1 // pred_fallthru
      _
    // Predicated region
    $region54: #{tpu_custom_call.1} parent=1 // pred_check
      _
    $region55: #{tpu_custom_call.1} parent=1 // pred_check_branch
      %106 = sbr.rel (0) target = $region57
    $region56: #{tpu_custom_call.1} parent=1 // pred_region
      %107 = dma.done [#allocation9], 16
    $region57: #{tpu_custom_call.1} parent=1 // pred_fallthru
      _
    // Predicated region
    $region58: #{tpu_custom_call.1} parent=1 // pred_check
      _
    $region59: #{tpu_custom_call.1} parent=1 // pred_check_branch
      %109 = sbr.rel (0) target = $region61
    $region60: #{tpu_custom_call.1} parent=1 // pred_region
      %110 = dma.done [#allocation12], 4096
    $region61: #{tpu_custom_call.1} parent=1 // pred_fallthru
      _
    %v111 = vld [vmem:[#allocation2] sm:$0xff]
    %v112 = vld [vmem:[#allocation2 + $0x8] sm:$0xff]
    %v113 = vld [vmem:[#allocation2 + $0x10] sm:$0xff]
    %v114 = vld [vmem:[#allocation2 + $0x18] sm:$0xff]
    %v115 = vlaneseq
    %v116 = vshrl.u32 %v115, 7
    %v117 = vadd.s32 %v116, 8
    %v118 = vadd.s32 %v116, 16
    %v119 = vadd.s32 %v116, 24
    %vm120 = vcmp.lt.s32.totalorder %v116, 0
    %v121 = vsub.s32 0, %v116
    %v122 = vsel %vm120, %v121, %v116
    %v123 = vshrl.u32 %v122, 4
    %v124 = vand.u32 %v122, 15
    %v125 = vsub.s32 0, %v124
    %v126 = vsel %vm120, %v125, %v124
    %vm127 = vcmp.lt.s32.totalorder %v117, 0
    %v128 = vsub.s32 0, %v117
    %v129 = vsel %vm127, %v128, %v117
    %v130 = vshrl.u32 %v129, 4
    %v131 = vand.u32 %v129, 15
    %v132 = vsub.s32 0, %v131
    %v133 = vsel %vm127, %v132, %v131
    %vm134 = vcmp.lt.s32.totalorder %v118, 0
    %v135 = vsub.s32 0, %v118
    %v136 = vsel %vm134, %v135, %v118
    %v137 = vshrl.u32 %v136, 4
    %v138 = vand.u32 %v136, 15
    %v139 = vsub.s32 0, %v138
    %v140 = vsel %vm134, %v139, %v138
    %vm141 = vcmp.lt.s32.totalorder %v119, 0
    %v142 = vsub.s32 0, %v119
    %v143 = vsel %vm141, %v142, %v119
    %v144 = vshrl.u32 %v143, 4
    %v145 = vand.u32 %v143, 15
    %v146 = vsub.s32 0, %v145
    %v147 = vsel %vm141, %v146, %v145
    %vm148 = vcmp.ne.s32.totalorder %v126, 0
    %vm149 = vcmp.ne.s32.totalorder %v133, 0
    %vm150 = vcmp.ne.s32.totalorder %v140, 0
    %vm151 = vcmp.ne.s32.totalorder %v147, 0
    %vm152 = vcmp.lt.s32.totalorder %v126, 0
    %vm153 = vcmp.lt.s32.totalorder %v133, 0
    %vm154 = vcmp.lt.s32.totalorder %v140, 0
    %vm155 = vcmp.lt.s32.totalorder %v147, 0
    %vm156 = vmand %vm152, %vm148
    %vm157 = vmand %vm153, %vm149
    %vm158 = vmand %vm154, %vm150
    %vm159 = vmand %vm155, %vm151
    %v160 = vadd.s32 %v126, 16
    %v161 = vadd.s32 %v133, 16
    %v162 = vadd.s32 %v140, 16
    %v163 = vadd.s32 %v147, 16
    %v164 = vsel %vm156, %v160, %v126
    %v165 = vsel %vm157, %v161, %v133
    %v166 = vsel %vm158, %v162, %v140
    %v167 = vsel %vm159, %v163, %v147
    %v168 = vlaneseq
    %v169 = vand.u32 %v168, 127
    %vm170 = vcmp.ge.s32.totalorder %v169, 8
    %vm171 = vcmp.lt.s32.totalorder %v169, 120
    %vm172 = vcmp.ge.s32.totalorder %v164, 1
    %vm173 = vcmp.ge.s32.totalorder %v165, 1
    %vm174 = vcmp.ge.s32.totalorder %v166, 1
    %vm175 = vcmp.ge.s32.totalorder %v167, 1
    %vm176 = vcmp.lt.s32.totalorder %v164, 15
    %vm177 = vcmp.lt.s32.totalorder %v165, 15
    %vm178 = vcmp.lt.s32.totalorder %v166, 15
    %vm179 = vcmp.lt.s32.totalorder %v167, 15
    %v180 = vrot.slane %v111, 7
    %v181 = vrot.slane %v112, 7
    %v182 = vrot.slane %v113, 7
    %v183 = vrot.slane %v114, 7
    %vm184 = vcmp.lt.s32.totalorder %v116, 1
    %v185 = vsel %vm184, %v182, %v183
    %v186 = vsel %vm184, %v181, %v182
    %v187 = vsel %vm184, %v180, %v181
    %v188 = vsel %vm184, %v183, %v180
    %v189 = vsel %vm172, %v188, 0.0
    %v190 = vsel %vm173, %v187, 0.0
    %v191 = vsel %vm174, %v186, 0.0
    %v192 = vsel %vm175, %v185, 0.0
    %193 = vrot.lane.b32.xlu0 %v189, 8
    %v194 = vpop.permute.xlu0 %193
    %195 = vrot.lane.b32.xlu0 %v190, 8
    %v196 = vpop.permute.xlu0 %195
    %197 = vrot.lane.b32.xlu0 %v191, 8
    %v198 = vpop.permute.xlu0 %197
    %199 = vrot.lane.b32.xlu0 %v192, 8
    %v200 = vpop.permute.xlu0 %199
    %v201 = vsel %vm170, %v194, 0.0
    %v202 = vsel %vm170, %v196, 0.0
    %v203 = vsel %vm170, %v198, 0.0
    %v204 = vsel %vm170, %v200, 0.0
    %v205 = vld [vmem:[#allocation5] sm:$0x1]
    %v206 = vlaneseq
    %v207 = vshrl.u32 %v206, 7
    %v208 = vsub.s32 0, %v207
    %v209 = vrot.slane %v205, %v208
    %v210 = vmul.f32 %v201, %v209
    %v211 = vmul.f32 %v202, %v209
    %v212 = vmul.f32 %v203, %v209
    %v213 = vmul.f32 %v204, %v209
    %v214 = vld [vmem:[#allocation5 + $0x1] sm:$0x1]
    %v215 = vlaneseq
    %v216 = vshrl.u32 %v215, 7
    %v217 = vsub.s32 0, %v216
    %v218 = vrot.slane %v214, %v217
    %v219 = vmul.f32 %v189, %v218
    %v220 = vmul.f32 %v190, %v218
    %v221 = vmul.f32 %v191, %v218
    %v222 = vmul.f32 %v192, %v218
    %v223 = vadd.f32 %v210, %v219
    %v224 = vadd.f32 %v211, %v220
    %v225 = vadd.f32 %v212, %v221
    %v226 = vadd.f32 %v213, %v222
    %227 = vrot.lane.b32.xlu0 %v189, 120
    %v228 = vpop.permute.xlu0 %227
    %229 = vrot.lane.b32.xlu0 %v190, 120
    %v230 = vpop.permute.xlu0 %229
    %231 = vrot.lane.b32.xlu0 %v191, 120
    %v232 = vpop.permute.xlu0 %231
    %233 = vrot.lane.b32.xlu0 %v192, 120
    %v234 = vpop.permute.xlu0 %233
    %v235 = vsel %vm171, %v228, 0.0
    %v236 = vsel %vm171, %v230, 0.0
    %v237 = vsel %vm171, %v232, 0.0
    %v238 = vsel %vm171, %v234, 0.0
    %v239 = vld [vmem:[#allocation5 + $0x2] sm:$0x1]
    %v240 = vlaneseq
    %v241 = vshrl.u32 %v240, 7
    %v242 = vsub.s32 0, %v241
    %v243 = vrot.slane %v239, %v242
    %v244 = vmul.f32 %v235, %v243
    %v245 = vmul.f32 %v236, %v243
    %v246 = vmul.f32 %v237, %v243
    %v247 = vmul.f32 %v238, %v243
    %v248 = vadd.f32 %v223, %v244
    %v249 = vadd.f32 %v224, %v245
    %v250 = vadd.f32 %v225, %v246
    %v251 = vadd.f32 %v226, %v247
    %252 = vrot.lane.b32.xlu0 %v111, 8
    %v253 = vpop.permute.xlu0 %252
    %254 = vrot.lane.b32.xlu0 %v112, 8
    %v255 = vpop.permute.xlu0 %254
    %256 = vrot.lane.b32.xlu0 %v113, 8
    %v257 = vpop.permute.xlu0 %256
    %258 = vrot.lane.b32.xlu0 %v114, 8
    %v259 = vpop.permute.xlu0 %258
    %v260 = vsel %vm170, %v253, 0.0
    %v261 = vsel %vm170, %v255, 0.0
    %v262 = vsel %vm170, %v257, 0.0
    %v263 = vsel %vm170, %v259, 0.0
    %v264 = vld [vmem:[#allocation5 + $0x3] sm:$0x1]
    %v265 = vlaneseq
    %v266 = vshrl.u32 %v265, 7
    %v267 = vsub.s32 0, %v266
    %v268 = vrot.slane %v264, %v267
    %v269 = vmul.f32 %v260, %v268
    %v270 = vmul.f32 %v261, %v268
    %v271 = vmul.f32 %v262, %v268
    %v272 = vmul.f32 %v263, %v268
    %v273 = vadd.f32 %v248, %v269
    %v274 = vadd.f32 %v249, %v270
    %v275 = vadd.f32 %v250, %v271
    %v276 = vadd.f32 %v251, %v272
    %v277 = vld [vmem:[#allocation5 + $0x4] sm:$0x1]
    %v278 = vlaneseq
    %v279 = vshrl.u32 %v278, 7
    %v280 = vsub.s32 0, %v279
    %v281 = vrot.slane %v277, %v280
    %v282 = vmul.f32 %v111, %v281
    %v283 = vmul.f32 %v112, %v281
    %v284 = vmul.f32 %v113, %v281
    %v285 = vmul.f32 %v114, %v281
    %v286 = vadd.f32 %v273, %v282
    %v287 = vadd.f32 %v274, %v283
    %v288 = vadd.f32 %v275, %v284
    %v289 = vadd.f32 %v276, %v285
    %290 = vrot.lane.b32.xlu0 %v111, 120
    %v291 = vpop.permute.xlu0 %290
    %292 = vrot.lane.b32.xlu0 %v112, 120
    %v293 = vpop.permute.xlu0 %292
    %294 = vrot.lane.b32.xlu0 %v113, 120
    %v295 = vpop.permute.xlu0 %294
    %296 = vrot.lane.b32.xlu0 %v114, 120
    %v297 = vpop.permute.xlu0 %296
    %v298 = vsel %vm171, %v291, 0.0
    %v299 = vsel %vm171, %v293, 0.0
    %v300 = vsel %vm171, %v295, 0.0
    %v301 = vsel %vm171, %v297, 0.0
    %v302 = vld [vmem:[#allocation5 + $0x5] sm:$0x1]
    %v303 = vlaneseq
    %v304 = vshrl.u32 %v303, 7
    %v305 = vsub.s32 0, %v304
    %v306 = vrot.slane %v302, %v305
    %v307 = vmul.f32 %v298, %v306
    %v308 = vmul.f32 %v299, %v306
    %v309 = vmul.f32 %v300, %v306
    %v310 = vmul.f32 %v301, %v306
    %v311 = vadd.f32 %v286, %v307
    %v312 = vadd.f32 %v287, %v308
    %v313 = vadd.f32 %v288, %v309
    %v314 = vadd.f32 %v289, %v310
    %v315 = vrot.slane %v111, 1
    %v316 = vrot.slane %v112, 1
    %v317 = vrot.slane %v113, 1
    %v318 = vrot.slane %v114, 1
    %vm319 = vcmp.lt.s32.totalorder %v116, 7
    %v320 = vsel %vm319, %v317, %v318
    %v321 = vsel %vm319, %v316, %v317
    %v322 = vsel %vm319, %v315, %v316
    %v323 = vsel %vm319, %v318, %v315
    %v324 = vsel %vm176, %v322, 0.0
    %v325 = vsel %vm177, %v321, 0.0
    %v326 = vsel %vm178, %v320, 0.0
    %v327 = vsel %vm179, %v323, 0.0
    %328 = vrot.lane.b32.xlu0 %v324, 8
    %v329 = vpop.permute.xlu0 %328
    %330 = vrot.lane.b32.xlu0 %v325, 8
    %v331 = vpop.permute.xlu0 %330
    %332 = vrot.lane.b32.xlu0 %v326, 8
    %v333 = vpop.permute.xlu0 %332
    %334 = vrot.lane.b32.xlu0 %v327, 8
    %v335 = vpop.permute.xlu0 %334
    %v336 = vsel %vm170, %v329, 0.0
    %v337 = vsel %vm170, %v331, 0.0
    %v338 = vsel %vm170, %v333, 0.0
    %v339 = vsel %vm170, %v335, 0.0
    %v340 = vld [vmem:[#allocation5 + $0x6] sm:$0x1]
    %v341 = vlaneseq
    %v342 = vshrl.u32 %v341, 7
    %v343 = vsub.s32 0, %v342
    %v344 = vrot.slane %v340, %v343
    %v345 = vmul.f32 %v336, %v344
    %v346 = vmul.f32 %v337, %v344
    %v347 = vmul.f32 %v338, %v344
    %v348 = vmul.f32 %v339, %v344
    %v349 = vadd.f32 %v311, %v345
    %v350 = vadd.f32 %v312, %v346
    %v351 = vadd.f32 %v313, %v347
    %v352 = vadd.f32 %v314, %v348
    %v353 = vld [vmem:[#allocation5 + $0x7] sm:$0x1]
    %v354 = vlaneseq
    %v355 = vshrl.u32 %v354, 7
    %v356 = vsub.s32 0, %v355
    %v357 = vrot.slane %v353, %v356
    %v358 = vmul.f32 %v324, %v357
    %v359 = vmul.f32 %v325, %v357
    %v360 = vmul.f32 %v326, %v357
    %v361 = vmul.f32 %v327, %v357
    %v362 = vadd.f32 %v349, %v358
    %v363 = vadd.f32 %v350, %v359
    %v364 = vadd.f32 %v351, %v360
    %v365 = vadd.f32 %v352, %v361
    %366 = vrot.lane.b32.xlu0 %v324, 120
    %v367 = vpop.permute.xlu0 %366
    %368 = vrot.lane.b32.xlu0 %v325, 120
    %v369 = vpop.permute.xlu0 %368
    %370 = vrot.lane.b32.xlu0 %v326, 120
    %v371 = vpop.permute.xlu0 %370
    %372 = vrot.lane.b32.xlu0 %v327, 120
    %v373 = vpop.permute.xlu0 %372
    %v374 = vsel %vm171, %v367, 0.0
    %v375 = vsel %vm171, %v369, 0.0
    %v376 = vsel %vm171, %v371, 0.0
    %v377 = vsel %vm171, %v373, 0.0
    %v378 = vld [vmem:[#allocation5 + $0x8] sm:$0x1]
    %v379 = vlaneseq
    %v380 = vshrl.u32 %v379, 7
    %v381 = vsub.s32 0, %v380
    %v382 = vrot.slane %v378, %v381
    %v383 = vmul.f32 %v374, %v382
    %v384 = vmul.f32 %v375, %v382
    %v385 = vmul.f32 %v376, %v382
    %v386 = vmul.f32 %v377, %v382
    %v387 = vadd.f32 %v362, %v383
    %v388 = vadd.f32 %v363, %v384
    %v389 = vadd.f32 %v364, %v385
    %v390 = vadd.f32 %v365, %v386
    %v391 = vld [vmem:[#allocation7] sm:$0x1]
    %v393 = vlaneseq
    %v394 = vshrl.u32 %v393, 7
    %v395 = vsub.s32 0, %v394
    %v396 = vrot.slane %v391, %v395
    %v398 = vadd.f32 %v387, %v396
    %v399 = vadd.f32 %v388, %v396
    %v400 = vadd.f32 %v389, %v396
    %v401 = vadd.f32 %v390, %v396
    %v402 = vmul.f32 %v398, 0.1
    %v403 = vmul.f32 %v399, 0.1
    %v404 = vmul.f32 %v400, 0.1
    %v405 = vmul.f32 %v401, 0.1
    %v406 = vmax.f32 %v398, %v402
    %v407 = vmax.f32 %v399, %v403
    %v408 = vmax.f32 %v400, %v404
    %v409 = vmax.f32 %v401, %v405
    %v410 = vld [vmem:[#allocation8] sm:$0xff]
    %v411 = vld [vmem:[#allocation8 + $0x8] sm:$0xff]
    %v412 = vld [vmem:[#allocation8 + $0x10] sm:$0xff]
    %v413 = vld [vmem:[#allocation8 + $0x18] sm:$0xff]
    %v414 = vld [vmem:[#allocation8 + $0x20] sm:$0xff]
    %v415 = vld [vmem:[#allocation8 + $0x28] sm:$0xff]
    %v416 = vld [vmem:[#allocation8 + $0x30] sm:$0xff]
    %v417 = vld [vmem:[#allocation8 + $0x38] sm:$0xff]
    %v418 = vld [vmem:[#allocation8 + $0x40] sm:$0xff]
    %v419 = vld [vmem:[#allocation8 + $0x48] sm:$0xff]
    %v420 = vld [vmem:[#allocation8 + $0x50] sm:$0xff]
    %v421 = vld [vmem:[#allocation8 + $0x58] sm:$0xff]
    %v422 = vld [vmem:[#allocation8 + $0x60] sm:$0xff]
    %v423 = vld [vmem:[#allocation8 + $0x68] sm:$0xff]
    %v424 = vld [vmem:[#allocation8 + $0x70] sm:$0xff]
    %v425 = vld [vmem:[#allocation8 + $0x78] sm:$0xff]
    %v426 = vld [vmem:[#allocation10] sm:$0x1]
    %v428 = vlaneseq
    %v429 = vshrl.u32 %v428, 7
    %v430 = vsub.s32 0, %v429
    %v431 = vrot.slane %v426, %v430
    %433 = vmatprep.subr.mxu0 0.0
    %434 = vmatpush1.msra.mxu0 %v410
    %435 = vmatprep.subr.mxu0 0.0
    %436 = vmatpush1.msra.mxu0 %v411
    %437 = vmatprep.subr.mxu0 0.0
    %438 = vmatpush1.msra.mxu0 %v412
    %439 = vmatprep.subr.mxu0 0.0
    %440 = vmatpush1.msra.mxu0 %v413
    %441 = vmatprep.subr.mxu0 0.0
    %442 = vmatpush1.msra.mxu0 %v414
    %443 = vmatprep.subr.mxu0 0.0
    %444 = vmatpush1.msra.mxu0 %v415
    %445 = vmatprep.subr.mxu0 0.0
    %446 = vmatpush1.msra.mxu0 %v416
    %447 = vmatprep.subr.mxu0 0.0
    %448 = vmatpush1.msra.mxu0 %v417
    %449 = vmatprep.subr.mxu0 0.0
    %450 = vmatpush1.msra.mxu0 %v418
    %451 = vmatprep.subr.mxu0 0.0
    %452 = vmatpush1.msra.mxu0 %v419
    %453 = vmatprep.subr.mxu0 0.0
    %454 = vmatpush1.msra.mxu0 %v420
    %455 = vmatprep.subr.mxu0 0.0
    %456 = vmatpush1.msra.mxu0 %v421
    %457 = vmatprep.subr.mxu0 0.0
    %458 = vmatpush1.msra.mxu0 %v422
    %459 = vmatprep.subr.mxu0 0.0
    %460 = vmatpush1.msra.mxu0 %v423
    %461 = vmatprep.subr.mxu0 0.0
    %462 = vmatpush1.msra.mxu0 %v424
    %463 = vmatprep.subr.mxu0 0.0
    %464 = vmatpush1.msra.mxu0 %v425
    %465 = vmatprep.subr.mxu0 0.0
    %466 = vmatpush1.msra.mxu0 0.0
    %467 = vmatprep.subr.mxu0 0.0
    %468 = vmatpush1.msra.mxu0 0.0
    %469 = vmatprep.subr.mxu0 0.0
    %470 = vmatpush1.msra.mxu0 0.0
    %471 = vmatprep.subr.mxu0 0.0
    %472 = vmatpush1.msra.mxu0 0.0
    %473 = vmatprep.subr.mxu0 0.0
    %474 = vmatpush1.msra.mxu0 0.0
    %475 = vmatprep.subr.mxu0 0.0
    %476 = vmatpush1.msra.mxu0 0.0
    %477 = vmatprep.subr.mxu0 0.0
    %478 = vmatpush1.msra.mxu0 0.0
    %479 = vmatprep.subr.mxu0 0.0
    %480 = vmatpush1.msra.mxu0 0.0
    %481 = vmatprep.subr.mxu0 0.0
    %482 = vmatpush1.msra.mxu0 0.0
    %483 = vmatprep.subr.mxu0 0.0
    %484 = vmatpush1.msra.mxu0 0.0
    %485 = vmatprep.subr.mxu0 0.0
    %486 = vmatpush1.msra.mxu0 0.0
    %487 = vmatprep.subr.mxu0 0.0
    %488 = vmatpush1.msra.mxu0 0.0
    %489 = vmatprep.subr.mxu0 0.0
    %490 = vmatpush1.msra.mxu0 0.0
    %491 = vmatprep.subr.mxu0 0.0
    %492 = vmatpush1.msra.mxu0 0.0
    %493 = vmatprep.subr.mxu0 0.0
    %494 = vmatpush1.msra.mxu0 0.0
    %495 = vmatprep.subr.mxu0 0.0
    %496 = vmatpush1.msra.mxu0 0.0
    %497 = vmatprep.mubr.f32.mxu0 0.0
    %498 = vmatmul.mubr.f32.gmra.mrb[0].mxu0 %v406
    %v499 = vpop.f32.mrb[0].mxu0
    %v500 = vadd.f32 %v431, %v499
    %v501 = vpop.f32.mrb[0].mxu0
    %502 = vmatprep.mubr.f32.mxu0 0.0
    %503 = vmatmul.mubr.f32.gmra.mrb[0].mxu0 %v407
    %v504 = vpop.f32.mrb[0].mxu0
    %v505 = vadd.f32 %v431, %v504
    %v506 = vpop.f32.mrb[0].mxu0
    %507 = vmatprep.mubr.f32.mxu0 0.0
    %508 = vmatmul.mubr.f32.gmra.mrb[0].mxu0 %v408
    %v509 = vpop.f32.mrb[0].mxu0
    %v510 = vadd.f32 %v431, %v509
    %v511 = vpop.f32.mrb[0].mxu0
    %512 = vmatprep.mubr.f32.mxu0 0.0
    %513 = vmatmul.mubr.f32.gmra.mrb[0].mxu0 %v409
    %v514 = vpop.f32.mrb[0].mxu0
    %v515 = vadd.f32 %v431, %v514
    %v516 = vpop.f32.mrb[0].mxu0
    %517 = vdwg.mxu0
    %v518 = vmul.f32 %v500, 0.1
    %v519 = vmul.f32 %v505, 0.1
    %v520 = vmul.f32 %v510, 0.1
    %v521 = vmul.f32 %v515, 0.1
    %v522 = vmax.f32 %v500, %v518
    %v523 = vmax.f32 %v505, %v519
    %v524 = vmax.f32 %v510, %v520
    %v525 = vmax.f32 %v515, %v521
    %v526 = vadd.f32 %v522, %v111
    %v527 = vadd.f32 %v523, %v112
    %v528 = vadd.f32 %v524, %v113
    %v529 = vadd.f32 %v525, %v114
    %v530 = vrot.slane %v526, 7
    %v531 = vrot.slane %v527, 7
    %v532 = vrot.slane %v528, 7
    %v533 = vrot.slane %v529, 7
    %v534 = vsel %vm184, %v532, %v533
    %v535 = vsel %vm184, %v531, %v532
    %v536 = vsel %vm184, %v530, %v531
    %v537 = vsel %vm184, %v533, %v530
    %v538 = vsel %vm172, %v537, 0.0
    %v539 = vsel %vm173, %v536, 0.0
    %v540 = vsel %vm174, %v535, 0.0
    %v541 = vsel %vm175, %v534, 0.0
    %542 = vrot.lane.b32.xlu0 %v538, 8
    %v543 = vpop.permute.xlu0 %542
    %544 = vrot.lane.b32.xlu0 %v539, 8
    %v545 = vpop.permute.xlu0 %544
    %546 = vrot.lane.b32.xlu0 %v540, 8
    %v547 = vpop.permute.xlu0 %546
    %548 = vrot.lane.b32.xlu0 %v541, 8
    %v549 = vpop.permute.xlu0 %548
    %v550 = vsel %vm170, %v543, 0.0
    %v551 = vsel %vm170, %v545, 0.0
    %v552 = vsel %vm170, %v547, 0.0
    %v553 = vsel %vm170, %v549, 0.0
    %v554 = vld [vmem:[%s5] sm:$0x1]
    %v555 = vlaneseq
    %v556 = vshrl.u32 %v555, 7
    %v557 = vsub.s32 0, %v556
    %v558 = vrot.slane %v554, %v557
    %v559 = vmul.f32 %v550, %v558
    %v560 = vmul.f32 %v551, %v558
    %v561 = vmul.f32 %v552, %v558
    %v562 = vmul.f32 %v553, %v558
    %v563 = vld [vmem:[%s5 + $0x1] sm:$0x1]
    %v564 = vlaneseq
    %v565 = vshrl.u32 %v564, 7
    %v566 = vsub.s32 0, %v565
    %v567 = vrot.slane %v563, %v566
    %v568 = vmul.f32 %v538, %v567
    %v569 = vmul.f32 %v539, %v567
    %v570 = vmul.f32 %v540, %v567
    %v571 = vmul.f32 %v541, %v567
    %v572 = vadd.f32 %v559, %v568
    %v573 = vadd.f32 %v560, %v569
    %v574 = vadd.f32 %v561, %v570
    %v575 = vadd.f32 %v562, %v571
    %576 = vrot.lane.b32.xlu0 %v538, 120
    %v577 = vpop.permute.xlu0 %576
    %578 = vrot.lane.b32.xlu0 %v539, 120
    %v579 = vpop.permute.xlu0 %578
    %580 = vrot.lane.b32.xlu0 %v540, 120
    %v581 = vpop.permute.xlu0 %580
    %582 = vrot.lane.b32.xlu0 %v541, 120
    %v583 = vpop.permute.xlu0 %582
    %v584 = vsel %vm171, %v577, 0.0
    %v585 = vsel %vm171, %v579, 0.0
    %v586 = vsel %vm171, %v581, 0.0
    %v587 = vsel %vm171, %v583, 0.0
    %v588 = vld [vmem:[%s5 + $0x2] sm:$0x1]
    %v589 = vlaneseq
    %v590 = vshrl.u32 %v589, 7
    %v591 = vsub.s32 0, %v590
    %v592 = vrot.slane %v588, %v591
    %v593 = vmul.f32 %v584, %v592
    %v594 = vmul.f32 %v585, %v592
    %v595 = vmul.f32 %v586, %v592
    %v596 = vmul.f32 %v587, %v592
    %v597 = vadd.f32 %v572, %v593
    %v598 = vadd.f32 %v573, %v594
    %v599 = vadd.f32 %v574, %v595
    %v600 = vadd.f32 %v575, %v596
    %601 = vrot.lane.b32.xlu0 %v526, 8
    %v602 = vpop.permute.xlu0 %601
    %603 = vrot.lane.b32.xlu0 %v527, 8
    %v604 = vpop.permute.xlu0 %603
    %605 = vrot.lane.b32.xlu0 %v528, 8
    %v606 = vpop.permute.xlu0 %605
    %607 = vrot.lane.b32.xlu0 %v529, 8
    %v608 = vpop.permute.xlu0 %607
    %v609 = vsel %vm170, %v602, 0.0
    %v610 = vsel %vm170, %v604, 0.0
    %v611 = vsel %vm170, %v606, 0.0
    %v612 = vsel %vm170, %v608, 0.0
    %v613 = vld [vmem:[%s5 + $0x3] sm:$0x1]
    %v614 = vlaneseq
    %v615 = vshrl.u32 %v614, 7
    %v616 = vsub.s32 0, %v615
    %v617 = vrot.slane %v613, %v616
    %v618 = vmul.f32 %v609, %v617
    %v619 = vmul.f32 %v610, %v617
    %v620 = vmul.f32 %v611, %v617
    %v621 = vmul.f32 %v612, %v617
    %v622 = vadd.f32 %v597, %v618
    %v623 = vadd.f32 %v598, %v619
    %v624 = vadd.f32 %v599, %v620
    %v625 = vadd.f32 %v600, %v621
    %v626 = vld [vmem:[%s5 + $0x4] sm:$0x1]
    %v627 = vlaneseq
    %v628 = vshrl.u32 %v627, 7
    %v629 = vsub.s32 0, %v628
    %v630 = vrot.slane %v626, %v629
    %v631 = vmul.f32 %v526, %v630
    %v632 = vmul.f32 %v527, %v630
    %v633 = vmul.f32 %v528, %v630
    %v634 = vmul.f32 %v529, %v630
    %v635 = vadd.f32 %v622, %v631
    %v636 = vadd.f32 %v623, %v632
    %v637 = vadd.f32 %v624, %v633
    %v638 = vadd.f32 %v625, %v634
    %639 = vrot.lane.b32.xlu0 %v526, 120
    %v640 = vpop.permute.xlu0 %639
    %641 = vrot.lane.b32.xlu0 %v527, 120
    %v642 = vpop.permute.xlu0 %641
    %643 = vrot.lane.b32.xlu0 %v528, 120
    %v644 = vpop.permute.xlu0 %643
    %645 = vrot.lane.b32.xlu0 %v529, 120
    %v646 = vpop.permute.xlu0 %645
    %v647 = vsel %vm171, %v640, 0.0
    %v648 = vsel %vm171, %v642, 0.0
    %v649 = vsel %vm171, %v644, 0.0
    %v650 = vsel %vm171, %v646, 0.0
    %v651 = vld [vmem:[%s5 + $0x5] sm:$0x1]
    %v652 = vlaneseq
    %v653 = vshrl.u32 %v652, 7
    %v654 = vsub.s32 0, %v653
    %v655 = vrot.slane %v651, %v654
    %v656 = vmul.f32 %v647, %v655
    %v657 = vmul.f32 %v648, %v655
    %v658 = vmul.f32 %v649, %v655
    %v659 = vmul.f32 %v650, %v655
    %v660 = vadd.f32 %v635, %v656
    %v661 = vadd.f32 %v636, %v657
    %v662 = vadd.f32 %v637, %v658
    %v663 = vadd.f32 %v638, %v659
    %v664 = vrot.slane %v526, 1
    %v665 = vrot.slane %v527, 1
    %v666 = vrot.slane %v528, 1
    %v667 = vrot.slane %v529, 1
    %v668 = vsel %vm319, %v666, %v667
    %v669 = vsel %vm319, %v665, %v666
    %v670 = vsel %vm319, %v664, %v665
    %v671 = vsel %vm319, %v667, %v664
    %v672 = vsel %vm176, %v670, 0.0
    %v673 = vsel %vm177, %v669, 0.0
    %v674 = vsel %vm178, %v668, 0.0
    %v675 = vsel %vm179, %v671, 0.0
    %676 = vrot.lane.b32.xlu0 %v672, 8
    %v677 = vpop.permute.xlu0 %676
    %678 = vrot.lane.b32.xlu0 %v673, 8
    %v679 = vpop.permute.xlu0 %678
    %680 = vrot.lane.b32.xlu0 %v674, 8
    %v681 = vpop.permute.xlu0 %680
    %682 = vrot.lane.b32.xlu0 %v675, 8
    %v683 = vpop.permute.xlu0 %682
    %v684 = vsel %vm170, %v677, 0.0
    %v685 = vsel %vm170, %v679, 0.0
    %v686 = vsel %vm170, %v681, 0.0
    %v687 = vsel %vm170, %v683, 0.0
    %v688 = vld [vmem:[%s5 + $0x6] sm:$0x1]
    %v689 = vlaneseq
    %v690 = vshrl.u32 %v689, 7
    %v691 = vsub.s32 0, %v690
    %v692 = vrot.slane %v688, %v691
    %v693 = vmul.f32 %v684, %v692
    %v694 = vmul.f32 %v685, %v692
    %v695 = vmul.f32 %v686, %v692
    %v696 = vmul.f32 %v687, %v692
    %v697 = vadd.f32 %v660, %v693
    %v698 = vadd.f32 %v661, %v694
    %v699 = vadd.f32 %v662, %v695
    %v700 = vadd.f32 %v663, %v696
    %v701 = vld [vmem:[%s5 + $0x7] sm:$0x1]
    %v702 = vlaneseq
    %v703 = vshrl.u32 %v702, 7
    %v704 = vsub.s32 0, %v703
    %v705 = vrot.slane %v701, %v704
    %v706 = vmul.f32 %v672, %v705
    %v707 = vmul.f32 %v673, %v705
    %v708 = vmul.f32 %v674, %v705
    %v709 = vmul.f32 %v675, %v705
    %v710 = vadd.f32 %v697, %v706
    %v711 = vadd.f32 %v698, %v707
    %v712 = vadd.f32 %v699, %v708
    %v713 = vadd.f32 %v700, %v709
    %714 = vrot.lane.b32.xlu0 %v672, 120
    %v715 = vpop.permute.xlu0 %714
    %716 = vrot.lane.b32.xlu0 %v673, 120
    %v717 = vpop.permute.xlu0 %716
    %718 = vrot.lane.b32.xlu0 %v674, 120
    %v719 = vpop.permute.xlu0 %718
    %720 = vrot.lane.b32.xlu0 %v675, 120
    %v721 = vpop.permute.xlu0 %720
    %v722 = vsel %vm171, %v715, 0.0
    %v723 = vsel %vm171, %v717, 0.0
    %v724 = vsel %vm171, %v719, 0.0
    %v725 = vsel %vm171, %v721, 0.0
    %v726 = vld [vmem:[%s5 + $0x8] sm:$0x1]
    %v727 = vlaneseq
    %v728 = vshrl.u32 %v727, 7
    %v729 = vsub.s32 0, %v728
    %v730 = vrot.slane %v726, %v729
    %v731 = vmul.f32 %v722, %v730
    %v732 = vmul.f32 %v723, %v730
    %v733 = vmul.f32 %v724, %v730
    %v734 = vmul.f32 %v725, %v730
    %v735 = vadd.f32 %v710, %v731
    %v736 = vadd.f32 %v711, %v732
    %v737 = vadd.f32 %v712, %v733
    %v738 = vadd.f32 %v713, %v734
    %v739 = vld [vmem:[%s6] sm:$0x1]
    %v741 = vlaneseq
    %v742 = vshrl.u32 %v741, 7
    %v743 = vsub.s32 0, %v742
    %v744 = vrot.slane %v739, %v743
    %v746 = vadd.f32 %v735, %v744
    %v747 = vadd.f32 %v736, %v744
    %v748 = vadd.f32 %v737, %v744
    %v749 = vadd.f32 %v738, %v744
    %v750 = vmul.f32 %v746, 0.1
    %v751 = vmul.f32 %v747, 0.1
    %v752 = vmul.f32 %v748, 0.1
    %v753 = vmul.f32 %v749, 0.1
    %v754 = vmax.f32 %v746, %v750
    %v755 = vmax.f32 %v747, %v751
    %v756 = vmax.f32 %v748, %v752
    %v757 = vmax.f32 %v749, %v753
    %v758 = vld [vmem:[#allocation11] sm:$0xff]
    %v759 = vld [vmem:[#allocation11 + $0x8] sm:$0xff]
    %v760 = vld [vmem:[#allocation11 + $0x10] sm:$0xff]
    %v761 = vld [vmem:[#allocation11 + $0x18] sm:$0xff]
    %v762 = vld [vmem:[#allocation11 + $0x20] sm:$0xff]
    %v763 = vld [vmem:[#allocation11 + $0x28] sm:$0xff]
    %v764 = vld [vmem:[#allocation11 + $0x30] sm:$0xff]
    %v765 = vld [vmem:[#allocation11 + $0x38] sm:$0xff]
    %v766 = vld [vmem:[#allocation11 + $0x40] sm:$0xff]
    %v767 = vld [vmem:[#allocation11 + $0x48] sm:$0xff]
    %v768 = vld [vmem:[#allocation11 + $0x50] sm:$0xff]
    %v769 = vld [vmem:[#allocation11 + $0x58] sm:$0xff]
    %v770 = vld [vmem:[#allocation11 + $0x60] sm:$0xff]
    %v771 = vld [vmem:[#allocation11 + $0x68] sm:$0xff]
    %v772 = vld [vmem:[#allocation11 + $0x70] sm:$0xff]
    %v773 = vld [vmem:[#allocation11 + $0x78] sm:$0xff]
    %v774 = vld [vmem:[#allocation11 + $0x80] sm:$0xff]
    %v775 = vld [vmem:[#allocation11 + $0x88] sm:$0xff]
    %v776 = vld [vmem:[#allocation11 + $0x90] sm:$0xff]
    %v777 = vld [vmem:[#allocation11 + $0x98] sm:$0xff]
    %v778 = vld [vmem:[#allocation11 + $0xa0] sm:$0xff]
    %v779 = vld [vmem:[#allocation11 + $0xa8] sm:$0xff]
    %v780 = vld [vmem:[#allocation11 + $0xb0] sm:$0xff]
    %v781 = vld [vmem:[#allocation11 + $0xb8] sm:$0xff]
    %v782 = vld [vmem:[#allocation11 + $0xc0] sm:$0xff]
    %v783 = vld [vmem:[#allocation11 + $0xc8] sm:$0xff]
    %v784 = vld [vmem:[#allocation11 + $0xd0] sm:$0xff]
    %v785 = vld [vmem:[#allocation11 + $0xd8] sm:$0xff]
    %v786 = vld [vmem:[#allocation11 + $0xe0] sm:$0xff]
    %v787 = vld [vmem:[#allocation11 + $0xe8] sm:$0xff]
    %v788 = vld [vmem:[#allocation11 + $0xf0] sm:$0xff]
    %v789 = vld [vmem:[#allocation11 + $0xf8] sm:$0xff]
    %v790 = vld [vmem:[%s8] sm:$0x3]
    %v792 = vlaneseq
    %v793 = vshrl.u32 %v792, 7
    %v794 = vsub.s32 0, %v793
    %v795 = vrot.slane %v790, %v794
    %v796 = vlaneseq
    %v797 = vshrl.u32 %v796, 7
    %v798 = vsub.s32 1, %v797
    %v799 = vrot.slane %v790, %v798
    %802 = vmatprep.subr.mxu0 %v759
    %803 = vmatpush1.msra.mxu0 %v758
    %804 = vmatprep.subr.mxu0 %v761
    %805 = vmatpush1.msra.mxu0 %v760
    %806 = vmatprep.subr.mxu0 %v763
    %807 = vmatpush1.msra.mxu0 %v762
    %808 = vmatprep.subr.mxu0 %v765
    %809 = vmatpush1.msra.mxu0 %v764
    %810 = vmatprep.subr.mxu0 %v767
    %811 = vmatpush1.msra.mxu0 %v766
    %812 = vmatprep.subr.mxu0 %v769
    %813 = vmatpush1.msra.mxu0 %v768
    %814 = vmatprep.subr.mxu0 %v771
    %815 = vmatpush1.msra.mxu0 %v770
    %816 = vmatprep.subr.mxu0 %v773
    %817 = vmatpush1.msra.mxu0 %v772
    %818 = vmatprep.subr.mxu0 %v775
    %819 = vmatpush1.msra.mxu0 %v774
    %820 = vmatprep.subr.mxu0 %v777
    %821 = vmatpush1.msra.mxu0 %v776
    %822 = vmatprep.subr.mxu0 %v779
    %823 = vmatpush1.msra.mxu0 %v778
    %824 = vmatprep.subr.mxu0 %v781
    %825 = vmatpush1.msra.mxu0 %v780
    %826 = vmatprep.subr.mxu0 %v783
    %827 = vmatpush1.msra.mxu0 %v782
    %828 = vmatprep.subr.mxu0 %v785
    %829 = vmatpush1.msra.mxu0 %v784
    %830 = vmatprep.subr.mxu0 %v787
    %831 = vmatpush1.msra.mxu0 %v786
    %832 = vmatprep.subr.mxu0 %v789
    %833 = vmatpush1.msra.mxu0 %v788
    %834 = vmatprep.subr.mxu0 0.0
    %835 = vmatpush1.msra.mxu0 0.0
    %836 = vmatprep.subr.mxu0 0.0
    %837 = vmatpush1.msra.mxu0 0.0
    %838 = vmatprep.subr.mxu0 0.0
    %839 = vmatpush1.msra.mxu0 0.0
    %840 = vmatprep.subr.mxu0 0.0
    %841 = vmatpush1.msra.mxu0 0.0
    %842 = vmatprep.subr.mxu0 0.0
    %843 = vmatpush1.msra.mxu0 0.0
    %844 = vmatprep.subr.mxu0 0.0
    %845 = vmatpush1.msra.mxu0 0.0
    %846 = vmatprep.subr.mxu0 0.0
    %847 = vmatpush1.msra.mxu0 0.0
    %848 = vmatprep.subr.mxu0 0.0
    %849 = vmatpush1.msra.mxu0 0.0
    %850 = vmatprep.subr.mxu0 0.0
    %851 = vmatpush1.msra.mxu0 0.0
    %852 = vmatprep.subr.mxu0 0.0
    %853 = vmatpush1.msra.mxu0 0.0
    %854 = vmatprep.subr.mxu0 0.0
    %855 = vmatpush1.msra.mxu0 0.0
    %856 = vmatprep.subr.mxu0 0.0
    %857 = vmatpush1.msra.mxu0 0.0
    %858 = vmatprep.subr.mxu0 0.0
    %859 = vmatpush1.msra.mxu0 0.0
    %860 = vmatprep.subr.mxu0 0.0
    %861 = vmatpush1.msra.mxu0 0.0
    %862 = vmatprep.subr.mxu0 0.0
    %863 = vmatpush1.msra.mxu0 0.0
    %864 = vmatprep.subr.mxu0 0.0
    %865 = vmatpush1.msra.mxu0 0.0
    %866 = vmatprep.mubr.f32.mxu0 0.0
    %867 = vmatmul.mubr.f32.gmra.mrb[0].mxu0 %v754
    %v868 = vpop.f32.mrb[0].mxu0
    %v869 = vadd.f32 %v795, %v868
    %v870 = vpop.f32.mrb[0].mxu0
    %v871 = vadd.f32 %v799, %v870
    %872 = vmatprep.mubr.f32.mxu0 0.0
    %873 = vmatmul.mubr.f32.gmra.mrb[0].mxu0 %v755
    %v874 = vpop.f32.mrb[0].mxu0
    %v875 = vadd.f32 %v795, %v874
    %v876 = vpop.f32.mrb[0].mxu0
    %v877 = vadd.f32 %v799, %v876
    %878 = vmatprep.mubr.f32.mxu0 0.0
    %879 = vmatmul.mubr.f32.gmra.mrb[0].mxu0 %v756
    %v880 = vpop.f32.mrb[0].mxu0
    %v881 = vadd.f32 %v795, %v880
    %v882 = vpop.f32.mrb[0].mxu0
    %v883 = vadd.f32 %v799, %v882
    %884 = vmatprep.mubr.f32.mxu0 0.0
    %885 = vmatmul.mubr.f32.gmra.mrb[0].mxu0 %v757
    %v886 = vpop.f32.mrb[0].mxu0
    %v887 = vadd.f32 %v795, %v886
    %v888 = vpop.f32.mrb[0].mxu0
    %v889 = vadd.f32 %v799, %v888
    %890 = vdwg.mxu0
    %v891 = vmul.f32 %v869, 0.1
    %v892 = vmul.f32 %v871, 0.1
    %v893 = vmul.f32 %v875, 0.1
    %v894 = vmul.f32 %v877, 0.1
    %v895 = vmul.f32 %v881, 0.1
    %v896 = vmul.f32 %v883, 0.1
    %v897 = vmul.f32 %v887, 0.1
    %v898 = vmul.f32 %v889, 0.1
    %v899 = vmax.f32 %v869, %v891
    %v900 = vmax.f32 %v871, %v892
    %v901 = vmax.f32 %v875, %v893
    %v902 = vmax.f32 %v877, %v894
    %v903 = vmax.f32 %v881, %v895
    %v904 = vmax.f32 %v883, %v896
    %v905 = vmax.f32 %v887, %v897
    %v906 = vmax.f32 %v889, %v898
    %907 = vst [vmem:[#allocation13] sm:$0xff] %v899
    %908 = vst [vmem:[#allocation13 + $0x8] sm:$0xff] %v900
    %909 = vst [vmem:[#allocation13 + $0x10] sm:$0xff] %v901
    %910 = vst [vmem:[#allocation13 + $0x18] sm:$0xff] %v902
    %911 = vst [vmem:[#allocation13 + $0x20] sm:$0xff] %v903
    %912 = vst [vmem:[#allocation13 + $0x28] sm:$0xff] %v904
    %913 = vst [vmem:[#allocation13 + $0x30] sm:$0xff] %v905
    %914 = vst [vmem:[#allocation13 + $0x38] sm:$0xff] %v906
    // Predicated region
    $region62: #{tpu_custom_call.1} parent=1 // pred_check
      _
    $region63: #{tpu_custom_call.1} parent=1 // pred_check_branch
      %916 = sbr.rel (0) target = $region65
    $region64: #{tpu_custom_call.1} parent=1 // pred_region
      %s918 = ssub.s32 1024, 1024
      %919 = vsyncadd [#allocation4], %s918
      %s920 = sshll.u32 [#allocation13], 4
      %s921 = int_to_ptr.vmem [resolvable:$true] %s920
      %926 = dma.vmem_to_hbm [thread:$0]  %s921, 1024, %s9, [#allocation4], 256, 256, 16
    $region65: #{tpu_custom_call.1} parent=1 // pred_fallthru
      _
    // Predicated region
    $region66: #{tpu_custom_call.1} parent=1 // pred_check
      _
    $region67: #{tpu_custom_call.1} parent=1 // pred_check_branch
      %928 = sbr.rel (0) target = $region69
    $region68: #{tpu_custom_call.1} parent=1 // pred_region
      %929 = dma.done [#allocation4], 1024
    $region69: #{tpu_custom_call.1} parent=1 // pred_fallthru
      _
    %930 = vsyncpa [#allocation3], 1
    %931 = vsyncpa [#allocation6], 1
    %932 = vsyncpa [#allocation9], 1
    %933 = vsyncpa [#allocation12], 1
    %934 = vsyncpa [#allocation4], 1

</llo_original>
